<compile_context>
chip_gen: v6e
topology: v6e:2x2x1
jax: 0.10.0
libtpu: 0.0.40
codegen_flags: <defaults>
</compile_context>

<pallas_src>
import functools
import math

import jax
import jax.numpy as jnp
from jax.experimental import pallas as pl
from jax.experimental.pallas import tpu as pltpu


LOGICAL_SIZES = [100, 250, 500, 150, 50, 2]   # hidden widths of the PyTorch module
OUT_DIM = 2
BN_EPS = 1e-5
LANE = 128
SUBLANE = 16          # bf16 sublane-packing grain: keep batch tiles a multiple of 16
TB_MAX = 1024         # large tile -> grid-step overhead (~0.35 us) is amortized


def _round_up(n, m):
    return ((n + m - 1) // m) * m


def _choose_batch_tiling(B):
    """Pick (tb, bp): tiles evenly sized (bounded padding waste), tb <= TB_MAX, and >= 2
    grid steps whenever possible so v7x's second TensorCore isn't idle."""
    bp0 = _round_up(max(B, 1), SUBLANE)
    n_tiles = -(-bp0 // TB_MAX)                      # enough tiles to keep tb <= TB_MAX
    if bp0 >= 2 * SUBLANE:
        n_tiles = max(n_tiles, 2)                    # megacore: at least 2 parallel steps
    tb = _round_up(-(-bp0 // n_tiles), SUBLANE)      # evenly sized, sublane-aligned tiles
    bp = tb * n_tiles
    return tb, bp


def _fused_mlp_kernel(softmax, out_dim,
                      x_ref,
                      w1, b1, w2, b2, w3, b3, w4, b4, w5, b5,
                      w6,
                      out_ref):
    """One batch tile: entire 6-layer forward fused in VMEM.

    Inter-layer activations are bf16 (produced once per layer in the epilogue); the BN-shift
    add + ReLU are computed in f32 (v5e VPU has no bf16); MXU accumulation is f32.
    """
    h = x_ref[...]                                           # bf16 (tb, fin_p)

    def layer(h, w_ref, shift_ref):
        z = jnp.dot(h, w_ref[...], preferred_element_type=jnp.float32)
        # BN scale already folded into W; epilogue = shift + ReLU, one cast back to bf16.
        return jnp.maximum(z + shift_ref[...], 0.0).astype(jnp.bfloat16)

    h = layer(h, w1, b1)
    h = layer(h, w2, b2)
    h = layer(h, w3, b3)
    h = layer(h, w4, b4)
    h = layer(h, w5, b5)

    logits = jnp.dot(h, w6[...], preferred_element_type=jnp.float32)
    logits = jnp.maximum(logits, 0.0)                        # act6 = ReLU

    if softmax:
        # Softmax over the real classes only; padded lanes are masked out and written as 0.
        col = jax.lax.broadcasted_iota(jnp.int32, logits.shape, 1)
        valid = col < out_dim
        masked = jnp.where(valid, logits, -jnp.inf)
        m = jnp.max(masked, axis=-1, keepdims=True)
        e = jnp.where(valid, jnp.exp(masked - m), 0.0)
        logits = e * pl.reciprocal(jnp.sum(e, axis=-1, keepdims=True), approx=False)

    out_ref[...] = logits.astype(out_ref.dtype)


def bodmas_fc_forward(x, params, softmax=False):
    """x: [B, inputsize] float32. params: padded bf16 weights + folded-BN f32 shifts."""
    B, fin = x.shape
    fin_p = params["w1"].shape[0]
    out_p = params["w6"].shape[1]
    assert fin <= fin_p

    tb, bp = _choose_batch_tiling(B)

    # Pad + cast to bf16 in one shot: the kernel consumes bf16 anyway, so shipping f32
    # would double the input DMA for no benefit.
    xp = jnp.zeros((bp, fin_p), jnp.bfloat16).at[:B, :fin].set(x.astype(jnp.bfloat16))

    inputs = [xp]
    for i in range(1, 6):
        inputs += [params[f"w{i}"], params[f"shift{i}"]]
    inputs += [params["w6"]]

    def const_map(i):           # weights/shifts: same block every grid step -> stay resident
        return (0, 0)

    # NOTE: constant-index weight/shift blocks are still double-buffered by default
    # (~1.4 MiB total) — negligible at tb<=1024, so we skip pl.Buffered(1); revisit only
    # if tb is pushed toward 4096 against v7x's 64 MiB VMEM.
    in_specs = [pl.BlockSpec((tb, fin_p), lambda i: (i, 0))]
    for i in range(1, 6):
        in_specs.append(pl.BlockSpec(params[f"w{i}"].shape, const_map))
        in_specs.append(pl.BlockSpec(params[f"shift{i}"].shape, const_map))
    in_specs.append(pl.BlockSpec(params["w6"].shape, const_map))

    out_specs = pl.BlockSpec((tb, out_p), lambda i: (i, 0))

    flops = 2 * bp * sum(params[f"w{i}"].shape[0] * params[f"w{i}"].shape[1]
                         for i in range(1, 7))
    param_bytes = sum(int(v.size) * v.dtype.itemsize for v in params.values())
    bytes_accessed = int(xp.size) * 2 + param_bytes + bp * out_p * 2
    cost = pl.CostEstimate(
        flops=flops,
        transcendentals=(bp * out_p) if softmax else 0,
        bytes_accessed=bytes_accessed,
    )

    out = pl.pallas_call(
        functools.partial(_fused_mlp_kernel, softmax, OUT_DIM),
        out_shape=jax.ShapeDtypeStruct((bp, out_p), jnp.bfloat16),
        grid=(bp // tb,),
        in_specs=in_specs,
        out_specs=out_specs,
        compiler_params=pltpu.CompilerParams(
            dimension_semantics=("parallel",)),
        cost_estimate=cost,
    )(*inputs)

    return out[:B, :OUT_DIM].astype(jnp.float32)


def init_params(inputsize, key):
    """Deterministic params mirroring the PyTorch module shapes, prepared for the kernel.

    Linear weights: kaiming_uniform_(nonlinearity='relu') -> U(-b, b), b = sqrt(6/fan_in),
    stored transposed as [in, out], BN scale folded into the columns, zero-padded to
    128-lane multiples, and cast to bf16.  BN shift (eval) kept as f32 [1, out_padded].
    """
    sizes = [inputsize] + LOGICAL_SIZES
    padded = [_round_up(s, LANE) for s in sizes]
    params = {}
    for i in range(1, 7):
        fan_in, fan_out = sizes[i - 1], sizes[i]
        pin, pout = padded[i - 1], padded[i]
        key, kw = jax.random.split(key)
        bound = math.sqrt(6.0 / fan_in)
        w = jax.random.uniform(kw, (fan_in, fan_out), jnp.float32, -bound, bound)
        if i <= 5:  # BN only on layers 1..5
            key, kg, kb, km, kv = jax.random.split(key, 5)
            gamma = jax.random.uniform(kg, (1, fan_out), jnp.float32, 0.5, 1.5)
            beta = 0.1 * jax.random.normal(kb, (1, fan_out), jnp.float32)
            run_mean = 0.1 * jax.random.normal(km, (1, fan_out), jnp.float32)
            run_var = jax.random.uniform(kv, (1, fan_out), jnp.float32, 0.5, 1.5)
            scale = gamma / jnp.sqrt(run_var + BN_EPS)
            shift = beta - run_mean * scale
            w = w * scale                                    # fold BN scale into weights
            shift_p = jnp.zeros((1, pout), jnp.float32).at[:, :fan_out].set(shift)
            params[f"shift{i}"] = shift_p
        w_p = jnp.zeros((pin, pout), jnp.float32).at[:fan_in, :fan_out].set(w)
        params[f"w{i}"] = w_p.astype(jnp.bfloat16)
    return params


def reference_forward(x, params, softmax=False):
    """Pure-JAX reference mimicking the kernel's numerics (bf16 matmuls/activations, f32 acc)."""
    B, fin = x.shape
    fin_p = params["w1"].shape[0]
    h = jnp.zeros((B, fin_p), jnp.bfloat16).at[:, :fin].set(x.astype(jnp.bfloat16))
    for i in range(1, 6):
        z = jnp.dot(h, params[f"w{i}"], preferred_element_type=jnp.float32)
        h = jnp.maximum(z + params[f"shift{i}"], 0.0).astype(jnp.bfloat16)
    z = jnp.dot(h, params["w6"], preferred_element_type=jnp.float32)
    logits = jnp.maximum(z, 0.0)[:, :OUT_DIM]
    if softmax:
        logits = jax.nn.softmax(logits, axis=-1)
    return logits


if __name__ == "__main__":
    key = jax.random.PRNGKey(0)
    inputsize = 32
    batch = 8

    key, kx, kp = jax.random.split(key, 3)
    x = jax.random.normal(kx, (batch, inputsize), jnp.float32)
    params = init_params(inputsize, kp)

    out = bodmas_fc_forward(x, params, softmax=False)
    out = jax.block_until_ready(out)

    assert out.shape == (batch, OUT_DIM), out.shape
    assert bool(jnp.all(jnp.isfinite(out)))
    assert bool(jnp.all(out >= 0.0))  # final ReLU

    ref = reference_forward(x, params, softmax=False)
    assert bool(jnp.allclose(out, ref, rtol=3e-2, atol=3e-2)), (out, ref)

    print("KERNEL_OK")
</pallas_src>

<mosaic_0001>
module attributes {stable_mosaic.version = 11 : i64} {
  func.func @_fused_mlp_kernel(%arg0: i32, %arg1: memref<16x128xbf16, #tpu.memory_space<vmem>>, %arg2: memref<128x128xbf16, #tpu.memory_space<vmem>>, %arg3: memref<1x128xf32, #tpu.memory_space<vmem>>, %arg4: memref<128x256xbf16, #tpu.memory_space<vmem>>, %arg5: memref<1x256xf32, #tpu.memory_space<vmem>>, %arg6: memref<256x512xbf16, #tpu.memory_space<vmem>>, %arg7: memref<1x512xf32, #tpu.memory_space<vmem>>, %arg8: memref<512x256xbf16, #tpu.memory_space<vmem>>, %arg9: memref<1x256xf32, #tpu.memory_space<vmem>>, %arg10: memref<256x128xbf16, #tpu.memory_space<vmem>>, %arg11: memref<1x128xf32, #tpu.memory_space<vmem>>, %arg12: memref<128x128xbf16, #tpu.memory_space<vmem>>, %arg13: memref<16x128xbf16, #tpu.memory_space<vmem>>) attributes {dimension_semantics = [#tpu.dimension_semantics<parallel>], iteration_bounds = array<i64: 1>, scalar_prefetch = 0 : i64, scratch_operands = 0 : i64, tpu.core_type = #tpu.core_type<tc>, window_params = [{transform_indices = @transform_0, window_bounds = array<i64: 16, 128>}, {pipeline_mode = #tpu.pipeline_mode<synchronous>, transform_indices = @transform_1, window_bounds = array<i64: 128, 128>}, {pipeline_mode = #tpu.pipeline_mode<synchronous>, transform_indices = @transform_2, window_bounds = array<i64: 1, 128>}, {pipeline_mode = #tpu.pipeline_mode<synchronous>, transform_indices = @transform_3, window_bounds = array<i64: 128, 256>}, {pipeline_mode = #tpu.pipeline_mode<synchronous>, transform_indices = @transform_4, window_bounds = array<i64: 1, 256>}, {pipeline_mode = #tpu.pipeline_mode<synchronous>, transform_indices = @transform_5, window_bounds = array<i64: 256, 512>}, {pipeline_mode = #tpu.pipeline_mode<synchronous>, transform_indices = @transform_6, window_bounds = array<i64: 1, 512>}, {pipeline_mode = #tpu.pipeline_mode<synchronous>, transform_indices = @transform_7, window_bounds = array<i64: 512, 256>}, {pipeline_mode = #tpu.pipeline_mode<synchronous>, transform_indices = @transform_8, window_bounds = array<i64: 1, 256>}, {pipeline_mode = #tpu.pipeline_mode<synchronous>, transform_indices = @transform_9, window_bounds = array<i64: 256, 128>}, {pipeline_mode = #tpu.pipeline_mode<synchronous>, transform_indices = @transform_10, window_bounds = array<i64: 1, 128>}, {pipeline_mode = #tpu.pipeline_mode<synchronous>, transform_indices = @transform_11, window_bounds = array<i64: 128, 128>}, {transform_indices = @transform_12, window_bounds = array<i64: 16, 128>}]} {
    %c0 = arith.constant 0 : index
    %c0_0 = arith.constant 0 : index
    %0 = vector.load %arg1[%c0, %c0_0] : memref<16x128xbf16, #tpu.memory_space<vmem>>, vector<16x128xbf16>
    %c0_1 = arith.constant 0 : index
    %c0_2 = arith.constant 0 : index
    %1 = vector.load %arg2[%c0_1, %c0_2] : memref<128x128xbf16, #tpu.memory_space<vmem>>, vector<128x128xbf16>
    %cst = arith.constant dense<0.000000e+00> : vector<16x128xf32>
    %2 = tpu.matmul %0, %1, %cst {dimension_numbers = #tpu.dot_dimension_numbers<[1], [0], [0], [1], [0, 0, 1, 1], [], []>} : vector<16x128xbf16>, vector<128x128xbf16>, vector<16x128xf32> -> vector<16x128xf32>
    %c0_3 = arith.constant 0 : index
    %c0_4 = arith.constant 0 : index
    %3 = vector.load %arg3[%c0_3, %c0_4] : memref<1x128xf32, #tpu.memory_space<vmem>>, vector<1x128xf32>
    %4 = vector.broadcast %3 : vector<1x128xf32> to vector<16x128xf32>
    %5 = arith.addf %2, %4 : vector<16x128xf32>
    %cst_5 = arith.constant 0.000000e+00 : f32
    %6 = vector.broadcast %cst_5 : f32 to vector<16x128xf32>
    %7 = arith.maximumf %5, %6 : vector<16x128xf32>
    %8 = arith.truncf %7 : vector<16x128xf32> to vector<16x128xbf16>
    %c0_6 = arith.constant 0 : index
    %c0_7 = arith.constant 0 : index
    %9 = vector.load %arg4[%c0_6, %c0_7] : memref<128x256xbf16, #tpu.memory_space<vmem>>, vector<128x256xbf16>
    %cst_8 = arith.constant dense<0.000000e+00> : vector<16x256xf32>
    %10 = tpu.matmul %8, %9, %cst_8 {dimension_numbers = #tpu.dot_dimension_numbers<[1], [0], [0], [1], [0, 0, 1, 1], [], []>} : vector<16x128xbf16>, vector<128x256xbf16>, vector<16x256xf32> -> vector<16x256xf32>
    %c0_9 = arith.constant 0 : index
    %c0_10 = arith.constant 0 : index
    %11 = vector.load %arg5[%c0_9, %c0_10] : memref<1x256xf32, #tpu.memory_space<vmem>>, vector<1x256xf32>
    %12 = vector.broadcast %11 : vector<1x256xf32> to vector<16x256xf32>
    %13 = arith.addf %10, %12 : vector<16x256xf32>
    %cst_11 = arith.constant 0.000000e+00 : f32
    %14 = vector.broadcast %cst_11 : f32 to vector<16x256xf32>
    %15 = arith.maximumf %13, %14 : vector<16x256xf32>
    %16 = arith.truncf %15 : vector<16x256xf32> to vector<16x256xbf16>
    %c0_12 = arith.constant 0 : index
    %c0_13 = arith.constant 0 : index
    %17 = vector.load %arg6[%c0_12, %c0_13] : memref<256x512xbf16, #tpu.memory_space<vmem>>, vector<256x512xbf16>
    %cst_14 = arith.constant dense<0.000000e+00> : vector<16x512xf32>
    %18 = tpu.matmul %16, %17, %cst_14 {dimension_numbers = #tpu.dot_dimension_numbers<[1], [0], [0], [1], [0, 0, 1, 1], [], []>} : vector<16x256xbf16>, vector<256x512xbf16>, vector<16x512xf32> -> vector<16x512xf32>
    %c0_15 = arith.constant 0 : index
    %c0_16 = arith.constant 0 : index
    %19 = vector.load %arg7[%c0_15, %c0_16] : memref<1x512xf32, #tpu.memory_space<vmem>>, vector<1x512xf32>
    %20 = vector.broadcast %19 : vector<1x512xf32> to vector<16x512xf32>
    %21 = arith.addf %18, %20 : vector<16x512xf32>
    %cst_17 = arith.constant 0.000000e+00 : f32
    %22 = vector.broadcast %cst_17 : f32 to vector<16x512xf32>
    %23 = arith.maximumf %21, %22 : vector<16x512xf32>
    %24 = arith.truncf %23 : vector<16x512xf32> to vector<16x512xbf16>
    %c0_18 = arith.constant 0 : index
    %c0_19 = arith.constant 0 : index
    %25 = vector.load %arg8[%c0_18, %c0_19] : memref<512x256xbf16, #tpu.memory_space<vmem>>, vector<512x256xbf16>
    %cst_20 = arith.constant dense<0.000000e+00> : vector<16x256xf32>
    %26 = tpu.matmul %24, %25, %cst_20 {dimension_numbers = #tpu.dot_dimension_numbers<[1], [0], [0], [1], [0, 0, 1, 1], [], []>} : vector<16x512xbf16>, vector<512x256xbf16>, vector<16x256xf32> -> vector<16x256xf32>
    %c0_21 = arith.constant 0 : index
    %c0_22 = arith.constant 0 : index
    %27 = vector.load %arg9[%c0_21, %c0_22] : memref<1x256xf32, #tpu.memory_space<vmem>>, vector<1x256xf32>
    %28 = vector.broadcast %27 : vector<1x256xf32> to vector<16x256xf32>
    %29 = arith.addf %26, %28 : vector<16x256xf32>
    %cst_23 = arith.constant 0.000000e+00 : f32
    %30 = vector.broadcast %cst_23 : f32 to vector<16x256xf32>
    %31 = arith.maximumf %29, %30 : vector<16x256xf32>
    %32 = arith.truncf %31 : vector<16x256xf32> to vector<16x256xbf16>
    %c0_24 = arith.constant 0 : index
    %c0_25 = arith.constant 0 : index
    %33 = vector.load %arg10[%c0_24, %c0_25] : memref<256x128xbf16, #tpu.memory_space<vmem>>, vector<256x128xbf16>
    %cst_26 = arith.constant dense<0.000000e+00> : vector<16x128xf32>
    %34 = tpu.matmul %32, %33, %cst_26 {dimension_numbers = #tpu.dot_dimension_numbers<[1], [0], [0], [1], [0, 0, 1, 1], [], []>} : vector<16x256xbf16>, vector<256x128xbf16>, vector<16x128xf32> -> vector<16x128xf32>
    %c0_27 = arith.constant 0 : index
    %c0_28 = arith.constant 0 : index
    %35 = vector.load %arg11[%c0_27, %c0_28] : memref<1x128xf32, #tpu.memory_space<vmem>>, vector<1x128xf32>
    %36 = vector.broadcast %35 : vector<1x128xf32> to vector<16x128xf32>
    %37 = arith.addf %34, %36 : vector<16x128xf32>
    %cst_29 = arith.constant 0.000000e+00 : f32
    %38 = vector.broadcast %cst_29 : f32 to vector<16x128xf32>
    %39 = arith.maximumf %37, %38 : vector<16x128xf32>
    %40 = arith.truncf %39 : vector<16x128xf32> to vector<16x128xbf16>
    %c0_30 = arith.constant 0 : index
    %c0_31 = arith.constant 0 : index
    %41 = vector.load %arg12[%c0_30, %c0_31] : memref<128x128xbf16, #tpu.memory_space<vmem>>, vector<128x128xbf16>
    %cst_32 = arith.constant dense<0.000000e+00> : vector<16x128xf32>
    %42 = tpu.matmul %40, %41, %cst_32 {dimension_numbers = #tpu.dot_dimension_numbers<[1], [0], [0], [1], [0, 0, 1, 1], [], []>} : vector<16x128xbf16>, vector<128x128xbf16>, vector<16x128xf32> -> vector<16x128xf32>
    %cst_33 = arith.constant 0.000000e+00 : f32
    %43 = vector.broadcast %cst_33 : f32 to vector<16x128xf32>
    %44 = arith.maximumf %42, %43 : vector<16x128xf32>
    %45 = arith.truncf %44 : vector<16x128xf32> to vector<16x128xbf16>
    %c0_34 = arith.constant 0 : index
    %c0_35 = arith.constant 0 : index
    %46 = vector.load %arg13[%c0_34, %c0_35] : memref<16x128xbf16, #tpu.memory_space<vmem>>, vector<16x128xbf16>
    tpu.vector_store %arg13[%c0_34, %c0_35], %45 {strides = array<i32>} : memref<16x128xbf16, #tpu.memory_space<vmem>>, vector<16x128xbf16>,
    return
  }
  func.func @transform_0(%arg0: i32) -> (i32, i32) {
    %c0_i32 = arith.constant 0 : i32
    %c0_i32_0 = arith.constant 0 : i32
    return %arg0, %c0_i32 : i32, i32
  }
  func.func @transform_1(%arg0: i32) -> (i32, i32) {
    %c0_i32 = arith.constant 0 : i32
    %c0_i32_0 = arith.constant 0 : i32
    %c0_i32_1 = arith.constant 0 : i32
    return %c0_i32, %c0_i32_0 : i32, i32
  }
  func.func @transform_2(%arg0: i32) -> (i32, i32) {
    %c0_i32 = arith.constant 0 : i32
    %c0_i32_0 = arith.constant 0 : i32
    %c0_i32_1 = arith.constant 0 : i32
    return %c0_i32, %c0_i32_0 : i32, i32
  }
  func.func @transform_3(%arg0: i32) -> (i32, i32) {
    %c0_i32 = arith.constant 0 : i32
    %c0_i32_0 = arith.constant 0 : i32
    %c0_i32_1 = arith.constant 0 : i32
    return %c0_i32, %c0_i32_0 : i32, i32
  }
  func.func @transform_4(%arg0: i32) -> (i32, i32) {
    %c0_i32 = arith.constant 0 : i32
    %c0_i32_0 = arith.constant 0 : i32
    %c0_i32_1 = arith.constant 0 : i32
    return %c0_i32, %c0_i32_0 : i32, i32
  }
  func.func @transform_5(%arg0: i32) -> (i32, i32) {
    %c0_i32 = arith.constant 0 : i32
    %c0_i32_0 = arith.constant 0 : i32
    %c0_i32_1 = arith.constant 0 : i32
    return %c0_i32, %c0_i32_0 : i32, i32
  }
  func.func @transform_6(%arg0: i32) -> (i32, i32) {
    %c0_i32 = arith.constant 0 : i32
    %c0_i32_0 = arith.constant 0 : i32
    %c0_i32_1 = arith.constant 0 : i32
    return %c0_i32, %c0_i32_0 : i32, i32
  }
  func.func @transform_7(%arg0: i32) -> (i32, i32) {
    %c0_i32 = arith.constant 0 : i32
    %c0_i32_0 = arith.constant 0 : i32
    %c0_i32_1 = arith.constant 0 : i32
    return %c0_i32, %c0_i32_0 : i32, i32
  }
  func.func @transform_8(%arg0: i32) -> (i32, i32) {
    %c0_i32 = arith.constant 0 : i32
    %c0_i32_0 = arith.constant 0 : i32
    %c0_i32_1 = arith.constant 0 : i32
    return %c0_i32, %c0_i32_0 : i32, i32
  }
  func.func @transform_9(%arg0: i32) -> (i32, i32) {
    %c0_i32 = arith.constant 0 : i32
    %c0_i32_0 = arith.constant 0 : i32
    %c0_i32_1 = arith.constant 0 : i32
    return %c0_i32, %c0_i32_0 : i32, i32
  }
  func.func @transform_10(%arg0: i32) -> (i32, i32) {
    %c0_i32 = arith.constant 0 : i32
    %c0_i32_0 = arith.constant 0 : i32
    %c0_i32_1 = arith.constant 0 : i32
    return %c0_i32, %c0_i32_0 : i32, i32
  }
  func.func @transform_11(%arg0: i32) -> (i32, i32) {
    %c0_i32 = arith.constant 0 : i32
    %c0_i32_0 = arith.constant 0 : i32
    %c0_i32_1 = arith.constant 0 : i32
    return %c0_i32, %c0_i32_0 : i32, i32
  }
  func.func @transform_12(%arg0: i32) -> (i32, i32) {
    %c0_i32 = arith.constant 0 : i32
    %c0_i32_0 = arith.constant 0 : i32
    return %arg0, %c0_i32 : i32, i32
  }
}

</mosaic_0001>

<llo_original>
// kernel: tpu_custom_call.1
$region0: #{tpu_custom_call.1}
  #allocation0 [shape = 'u32[]', space=smem, size = 0x4, offset = 0x4, fixed_abs, tag = 'smem constant byte address 0x4 - core index']
  #allocation1 [shape = 'u32[144,128]{1,0:T(1,128)}', space=vmem, size = 0x12000, scoped, tag = 'internal scratch']
  %s0 = inlined_call_operand.hbm [shape: bf16[16,128], index: 0, kind: input, shape index: {}]
  %s1 = inlined_call_operand.hbm [shape: bf16[128,128], index: 1, kind: input, shape index: {}]
  %s2 = inlined_call_operand.vmem [shape: f32[1,128], index: 2, kind: input, shape index: {}]
  %s3 = inlined_call_operand.hbm [shape: bf16[128,256], index: 3, kind: input, shape index: {}]
  %s4 = inlined_call_operand.vmem [shape: f32[1,256], index: 4, kind: input, shape index: {}]
  %s5 = inlined_call_operand.hbm [shape: bf16[256,512], index: 5, kind: input, shape index: {}]
  %s6 = inlined_call_operand.vmem [shape: f32[1,512], index: 6, kind: input, shape index: {}]
  %s7 = inlined_call_operand.hbm [shape: bf16[512,256], index: 7, kind: input, shape index: {}]
  %s8 = inlined_call_operand.vmem [shape: f32[1,256], index: 8, kind: input, shape index: {}]
  %s9 = inlined_call_operand.hbm [shape: bf16[256,128], index: 9, kind: input, shape index: {}]
  %s10 = inlined_call_operand.vmem [shape: f32[1,128], index: 10, kind: input, shape index: {}]
  %s11 = inlined_call_operand.hbm [shape: bf16[128,128], index: 11, kind: input, shape index: {}]
  %s12 = inlined_call_operand.hbm [shape: bf16[16,128], index: 12, kind: output, shape index: {}]
  %s13 = sld [smem:[#allocation0]]
  $region86: #{tpu_custom_call.1} parent=0
    _
  %s15 = ssub.s32 1, %s13
  %s16 = scalar_select 0, %s15, %s13
  $region1: #{tpu_custom_call.1} parent=0
    #allocation2 [shape = 'u8[4096]{0}', space=vmem, size = 0x1000, scoped, tag = 'input window, operand 0, single buffered']
    #allocation3 [shape = 's32[1]{0}', space=sflag, size = 0x4, scoped, tag = 'scoped memory for tpu_custom_call.1']
    #allocation4 [shape = 's32[1]{0}', space=sflag, size = 0x4, scoped, tag = 'scoped memory for tpu_custom_call.1']
    #allocation5 [shape = 'u8[32768]{0}', space=vmem, size = 0x8000, scoped, tag = 'input window, operand 1, single buffered']
    #allocation6 [shape = 's32[1]{0}', space=sflag, size = 0x4, scoped, tag = 'scoped memory for tpu_custom_call.1']
    #allocation7 [shape = 'u8[65536]{0}', space=vmem, size = 0x10000, scoped, tag = 'input window, operand 3, single buffered']
    #allocation8 [shape = 'u8[262144]{0}', space=vmem, size = 0x40000, scoped, tag = 'input window, operand 5, single buffered']
    #allocation9 [shape = 's32[1]{0}', space=sflag, size = 0x4, scoped, tag = 'scoped memory for tpu_custom_call.1']
    #allocation10 [shape = 'u8[262144]{0}', space=vmem, size = 0x40000, scoped, tag = 'input window, operand 7, single buffered']
    #allocation11 [shape = 'u8[65536]{0}', space=vmem, size = 0x10000, scoped, tag = 'input window, operand 9, single buffered']
    #allocation12 [shape = 's32[1]{0}', space=sflag, size = 0x4, scoped, tag = 'scoped memory for tpu_custom_call.1']
    #allocation13 [shape = 'u8[32768]{0}', space=vmem, size = 0x8000, scoped, tag = 'input window, operand 11, single buffered']
    #allocation14 [shape = 'u8[4096]{0}', space=vmem, size = 0x1000, scoped, tag = 'output window, operand 0, single buffered']
    %17 = vsyncpa [#allocation3], 0
    %18 = vsyncpa [#allocation6], 0
    %19 = vsyncpa [#allocation9], 0
    %20 = vsyncpa [#allocation12], 0
    %21 = vsyncpa [#allocation4], 0
    // Predicated region
    $region2: #{tpu_custom_call.1} parent=1 // pred_check
      _
    $region3: #{tpu_custom_call.1} parent=1 // pred_check_branch
      %23 = sbr.rel (0) target = $region5
    $region4: #{tpu_custom_call.1} parent=1 // pred_region
      %s25 = ssub.s32 128, 128
      %26 = vsyncadd [#allocation3], %s25
      %s27 = sshll.u32 [#allocation2], 4
      %s28 = int_to_ptr.vmem [resolvable:$true] %s27
      %33 = dma.hbm_to_vmem [thread:$0]  %s0, 128, %s28, [#allocation3], 64, 64, 4
    $region5: #{tpu_custom_call.1} parent=1 // pred_fallthru
      _
    // Predicated region
    $region6: #{tpu_custom_call.1} parent=1 // pred_check
      _
    $region7: #{tpu_custom_call.1} parent=1 // pred_check_branch
      %35 = sbr.rel (0) target = $region9
    $region8: #{tpu_custom_call.1} parent=1 // pred_region
      %s37 = ssub.s32 1024, 1024
      %38 = vsyncadd [#allocation6], %s37
      %s39 = sshll.u32 [#allocation5], 4
      %s40 = int_to_ptr.vmem [resolvable:$true] %s39
      %45 = dma.hbm_to_vmem [thread:$0]  %s1, 1024, %s40, [#allocation6], 64, 64, 4
    $region9: #{tpu_custom_call.1} parent=1 // pred_fallthru
      _
    // Predicated region
    $region10: #{tpu_custom_call.1} parent=1 // pred_check
      _
    $region11: #{tpu_custom_call.1} parent=1 // pred_check_branch
      %47 = sbr.rel (0) target = $region13
    $region12: #{tpu_custom_call.1} parent=1 // pred_region
      _
    $region13: #{tpu_custom_call.1} parent=1 // pred_fallthru
      _
    // Predicated region
    $region14: #{tpu_custom_call.1} parent=1 // pred_check
      _
    $region15: #{tpu_custom_call.1} parent=1 // pred_check_branch
      %49 = sbr.rel (0) target = $region17
    $region16: #{tpu_custom_call.1} parent=1 // pred_region
      %s51 = ssub.s32 2048, 2048
      %52 = vsyncadd [#allocation6], %s51
      %s53 = sshll.u32 [#allocation7], 4
      %s54 = int_to_ptr.vmem [resolvable:$true] %s53
      %59 = dma.hbm_to_vmem [thread:$0]  %s3, 2048, %s54, [#allocation6], 128, 128, 8
    $region17: #{tpu_custom_call.1} parent=1 // pred_fallthru
      _
    // Predicated region
    $region18: #{tpu_custom_call.1} parent=1 // pred_check
      _
    $region19: #{tpu_custom_call.1} parent=1 // pred_check_branch
      %61 = sbr.rel (0) target = $region21
    $region20: #{tpu_custom_call.1} parent=1 // pred_region
      _
    $region21: #{tpu_custom_call.1} parent=1 // pred_fallthru
      _
    // Predicated region
    $region22: #{tpu_custom_call.1} parent=1 // pred_check
      _
    $region23: #{tpu_custom_call.1} parent=1 // pred_check_branch
      %63 = sbr.rel (0) target = $region25
    $region24: #{tpu_custom_call.1} parent=1 // pred_region
      %s65 = ssub.s32 8192, 8192
      %66 = vsyncadd [#allocation9], %s65
      %s67 = sshll.u32 [#allocation8], 4
      %s68 = int_to_ptr.vmem [resolvable:$true] %s67
      %73 = dma.hbm_to_vmem [thread:$0]  %s5, 8192, %s68, [#allocation9], 256, 256, 16
    $region25: #{tpu_custom_call.1} parent=1 // pred_fallthru
      _
    // Predicated region
    $region26: #{tpu_custom_call.1} parent=1 // pred_check
      _
    $region27: #{tpu_custom_call.1} parent=1 // pred_check_branch
      %75 = sbr.rel (0) target = $region29
    $region28: #{tpu_custom_call.1} parent=1 // pred_region
      _
    $region29: #{tpu_custom_call.1} parent=1 // pred_fallthru
      _
    // Predicated region
    $region30: #{tpu_custom_call.1} parent=1 // pred_check
      _
    $region31: #{tpu_custom_call.1} parent=1 // pred_check_branch
      %77 = sbr.rel (0) target = $region33
    $region32: #{tpu_custom_call.1} parent=1 // pred_region
      %s79 = ssub.s32 8192, 8192
      %80 = vsyncadd [#allocation9], %s79
      %s81 = sshll.u32 [#allocation10], 4
      %s82 = int_to_ptr.vmem [resolvable:$true] %s81
      %87 = dma.hbm_to_vmem [thread:$0]  %s7, 8192, %s82, [#allocation9], 128, 128, 8
    $region33: #{tpu_custom_call.1} parent=1 // pred_fallthru
      _
    // Predicated region
    $region34: #{tpu_custom_call.1} parent=1 // pred_check
      _
    $region35: #{tpu_custom_call.1} parent=1 // pred_check_branch
      %89 = sbr.rel (0) target = $region37
    $region36: #{tpu_custom_call.1} parent=1 // pred_region
      _
    $region37: #{tpu_custom_call.1} parent=1 // pred_fallthru
      _
    // Predicated region
    $region38: #{tpu_custom_call.1} parent=1 // pred_check
      _
    $region39: #{tpu_custom_call.1} parent=1 // pred_check_branch
      %91 = sbr.rel (0) target = $region41
    $region40: #{tpu_custom_call.1} parent=1 // pred_region
      %s93 = ssub.s32 2048, 2048
      %94 = vsyncadd [#allocation12], %s93
      %s95 = sshll.u32 [#allocation11], 4
      %s96 = int_to_ptr.vmem [resolvable:$true] %s95
      %101 = dma.hbm_to_vmem [thread:$0]  %s9, 2048, %s96, [#allocation12], 64, 64, 4
    $region41: #{tpu_custom_call.1} parent=1 // pred_fallthru
      _
    // Predicated region
    $region42: #{tpu_custom_call.1} parent=1 // pred_check
      _
    $region43: #{tpu_custom_call.1} parent=1 // pred_check_branch
      %103 = sbr.rel (0) target = $region45
    $region44: #{tpu_custom_call.1} parent=1 // pred_region
      _
    $region45: #{tpu_custom_call.1} parent=1 // pred_fallthru
      _
    // Predicated region
    $region46: #{tpu_custom_call.1} parent=1 // pred_check
      _
    $region47: #{tpu_custom_call.1} parent=1 // pred_check_branch
      %105 = sbr.rel (0) target = $region49
    $region48: #{tpu_custom_call.1} parent=1 // pred_region
      %s107 = ssub.s32 1024, 1024
      %108 = vsyncadd [#allocation12], %s107
      %s109 = sshll.u32 [#allocation13], 4
      %s110 = int_to_ptr.vmem [resolvable:$true] %s109
      %115 = dma.hbm_to_vmem [thread:$0]  %s11, 1024, %s110, [#allocation12], 64, 64, 4
    $region49: #{tpu_custom_call.1} parent=1 // pred_fallthru
      _
    // Predicated region
    $region50: #{tpu_custom_call.1} parent=1 // pred_check
      _
    $region51: #{tpu_custom_call.1} parent=1 // pred_check_branch
      %117 = sbr.rel (0) target = $region53
    $region52: #{tpu_custom_call.1} parent=1 // pred_region
      %118 = dma.done [#allocation3], 128
    $region53: #{tpu_custom_call.1} parent=1 // pred_fallthru
      _
    // Predicated region
    $region54: #{tpu_custom_call.1} parent=1 // pred_check
      _
    $region55: #{tpu_custom_call.1} parent=1 // pred_check_branch
      %120 = sbr.rel (0) target = $region57
    $region56: #{tpu_custom_call.1} parent=1 // pred_region
      %121 = dma.done [#allocation6], 1024
    $region57: #{tpu_custom_call.1} parent=1 // pred_fallthru
      _
    // Predicated region
    $region58: #{tpu_custom_call.1} parent=1 // pred_check
      _
    $region59: #{tpu_custom_call.1} parent=1 // pred_check_branch
      %123 = sbr.rel (0) target = $region61
    $region60: #{tpu_custom_call.1} parent=1 // pred_region
      %124 = dma.done [#allocation6], 2048
    $region61: #{tpu_custom_call.1} parent=1 // pred_fallthru
      _
    // Predicated region
    $region62: #{tpu_custom_call.1} parent=1 // pred_check
      _
    $region63: #{tpu_custom_call.1} parent=1 // pred_check_branch
      %126 = sbr.rel (0) target = $region65
    $region64: #{tpu_custom_call.1} parent=1 // pred_region
      %127 = dma.done [#allocation9], 8192
    $region65: #{tpu_custom_call.1} parent=1 // pred_fallthru
      _
    // Predicated region
    $region66: #{tpu_custom_call.1} parent=1 // pred_check
      _
    $region67: #{tpu_custom_call.1} parent=1 // pred_check_branch
      %129 = sbr.rel (0) target = $region69
    $region68: #{tpu_custom_call.1} parent=1 // pred_region
      %130 = dma.done [#allocation9], 8192
    $region69: #{tpu_custom_call.1} parent=1 // pred_fallthru
      _
    // Predicated region
    $region70: #{tpu_custom_call.1} parent=1 // pred_check
      _
    $region71: #{tpu_custom_call.1} parent=1 // pred_check_branch
      %132 = sbr.rel (0) target = $region73
    $region72: #{tpu_custom_call.1} parent=1 // pred_region
      %133 = dma.done [#allocation12], 2048
    $region73: #{tpu_custom_call.1} parent=1 // pred_fallthru
      _
    // Predicated region
    $region74: #{tpu_custom_call.1} parent=1 // pred_check
      _
    $region75: #{tpu_custom_call.1} parent=1 // pred_check_branch
      %135 = sbr.rel (0) target = $region77
    $region76: #{tpu_custom_call.1} parent=1 // pred_region
      %136 = dma.done [#allocation12], 1024
    $region77: #{tpu_custom_call.1} parent=1 // pred_fallthru
      _
    %v138 = vld [vmem:[#allocation2] sm:$0xf]
    %v139 = vld [vmem:[#allocation2 + $0x4] sm:$0xf]
    %v140 = vld [vmem:[#allocation5] sm:$0xf]
    %v141 = vld [vmem:[#allocation5 + $0x4] sm:$0xf]
    %v142 = vld [vmem:[#allocation5 + $0x8] sm:$0xf]
    %v143 = vld [vmem:[#allocation5 + $0xc] sm:$0xf]
    %v144 = vld [vmem:[#allocation5 + $0x10] sm:$0xf]
    %v145 = vld [vmem:[#allocation5 + $0x14] sm:$0xf]
    %v146 = vld [vmem:[#allocation5 + $0x18] sm:$0xf]
    %v147 = vld [vmem:[#allocation5 + $0x1c] sm:$0xf]
    %v148 = vld [vmem:[#allocation5 + $0x20] sm:$0xf]
    %v149 = vld [vmem:[#allocation5 + $0x24] sm:$0xf]
    %v150 = vld [vmem:[#allocation5 + $0x28] sm:$0xf]
    %v151 = vld [vmem:[#allocation5 + $0x2c] sm:$0xf]
    %v152 = vld [vmem:[#allocation5 + $0x30] sm:$0xf]
    %v153 = vld [vmem:[#allocation5 + $0x34] sm:$0xf]
    %v154 = vld [vmem:[#allocation5 + $0x38] sm:$0xf]
    %v155 = vld [vmem:[#allocation5 + $0x3c] sm:$0xf]
    %v156 = vld [vmem:[%s2] sm:$0x1]
    %v158 = vlaneseq
    %v159 = vshrl.u32 %v158, 7
    %v160 = vsub.s32 0, %v159
    %v161 = vrot.slane %v156, %v160
    %v165 = vunpack.c.l.b16 %v138
    %v166 = vunpack.c.l.b16 %v139
    %v167 = vpack.c.b16 %v166, %v165
    %v185 = vunpack.c.l.b16 %v140
    %v186 = vunpack.c.l.b16 %v141
    %v187 = vunpack.c.l.b16 %v142
    %v188 = vunpack.c.l.b16 %v143
    %v189 = vunpack.c.l.b16 %v144
    %v190 = vunpack.c.l.b16 %v145
    %v191 = vunpack.c.l.b16 %v146
    %v192 = vunpack.c.l.b16 %v147
    %v193 = vunpack.c.l.b16 %v148
    %v194 = vunpack.c.l.b16 %v149
    %v195 = vunpack.c.l.b16 %v150
    %v196 = vunpack.c.l.b16 %v151
    %v197 = vunpack.c.l.b16 %v152
    %v198 = vunpack.c.l.b16 %v153
    %v199 = vunpack.c.l.b16 %v154
    %v200 = vunpack.c.l.b16 %v155
    %v201 = vpack.c.b16 %v186, %v185
    %v202 = vpack.c.b16 %v188, %v187
    %v203 = vpack.c.b16 %v190, %v189
    %v204 = vpack.c.b16 %v192, %v191
    %v205 = vpack.c.b16 %v194, %v193
    %v206 = vpack.c.b16 %v196, %v195
    %v207 = vpack.c.b16 %v198, %v197
    %v208 = vpack.c.b16 %v200, %v199
    %217 = vmatprep.subr.bf16.mxu0 0
    %218 = vmatpush1.bf16.msra.mxu0 %v208
    %219 = vmatprep.subr.bf16.mxu0 0
    %220 = vmatpush1.bf16.msra.mxu0 %v207
    %221 = vmatprep.subr.bf16.mxu0 0
    %222 = vmatpush1.bf16.msra.mxu0 %v206
    %223 = vmatprep.subr.bf16.mxu0 0
    %224 = vmatpush1.bf16.msra.mxu0 %v205
    %225 = vmatprep.subr.bf16.mxu0 0
    %226 = vmatpush1.bf16.msra.mxu0 %v204
    %227 = vmatprep.subr.bf16.mxu0 0
    %228 = vmatpush1.bf16.msra.mxu0 %v203
    %229 = vmatprep.subr.bf16.mxu0 0
    %230 = vmatpush1.bf16.msra.mxu0 %v202
    %231 = vmatprep.subr.bf16.mxu0 0
    %232 = vmatpush1.bf16.msra.mxu0 %v201
    %233 = vmatprep.subr.bf16.mxu0 0
    %234 = vmatpush2.bf16.msra.mxu0 0
    %235 = vmatprep.subr.bf16.mxu0 0
    %236 = vmatpush2.bf16.msra.mxu0 0
    %237 = vmatprep.subr.bf16.mxu0 0
    %238 = vmatpush2.bf16.msra.mxu0 0
    %239 = vmatprep.subr.bf16.mxu0 0
    %240 = vmatpush2.bf16.msra.mxu0 0
    %241 = vmatprep.subr.bf16.mxu0 0
    %242 = vmatpush2.bf16.msra.mxu0 0
    %243 = vmatprep.subr.bf16.mxu0 0
    %244 = vmatpush2.bf16.msra.mxu0 0
    %245 = vmatprep.subr.bf16.mxu0 0
    %246 = vmatpush2.bf16.msra.mxu0 0
    %247 = vmatprep.subr.bf16.mxu0 0
    %248 = vmatpush2.bf16.msra.mxu0 0
    %249 = vmatprep.mubr.bf16.mxu0 0
    %250 = vmatmul.mubr.bf16.gmra.mxu0 %v167
    %v251 = vpop.f32.mrf.mxu0
    %v252 = vadd.f32 %v161, %v251
    %v253 = vpop.f32.mrf.mxu0
    %v254 = vpop.f32.mrf.mxu0
    %v255 = vadd.f32 %v161, %v254
    %v256 = vpop.f32.mrf.mxu0
    %257 = vdwg.mxu0
    %v258 = vmax.f32 %v252, 0.0
    %v259 = vmax.f32 %v255, 0.0
    %v260 = vpack.c.bf16 %v259, %v258
    %v261 = vld [vmem:[#allocation7] sm:$0xff]
    %v262 = vld [vmem:[#allocation7 + $0x8] sm:$0xff]
    %v263 = vld [vmem:[#allocation7 + $0x10] sm:$0xff]
    %v264 = vld [vmem:[#allocation7 + $0x18] sm:$0xff]
    %v265 = vld [vmem:[#allocation7 + $0x20] sm:$0xff]
    %v266 = vld [vmem:[#allocation7 + $0x28] sm:$0xff]
    %v267 = vld [vmem:[#allocation7 + $0x30] sm:$0xff]
    %v268 = vld [vmem:[#allocation7 + $0x38] sm:$0xff]
    %v269 = vld [vmem:[#allocation7 + $0x40] sm:$0xff]
    %v270 = vld [vmem:[#allocation7 + $0x48] sm:$0xff]
    %v271 = vld [vmem:[#allocation7 + $0x50] sm:$0xff]
    %v272 = vld [vmem:[#allocation7 + $0x58] sm:$0xff]
    %v273 = vld [vmem:[#allocation7 + $0x60] sm:$0xff]
    %v274 = vld [vmem:[#allocation7 + $0x68] sm:$0xff]
    %v275 = vld [vmem:[#allocation7 + $0x70] sm:$0xff]
    %v276 = vld [vmem:[#allocation7 + $0x78] sm:$0xff]
    %v277 = vld [vmem:[%s4] sm:$0x3]
    %v279 = vlaneseq
    %v280 = vshrl.u32 %v279, 7
    %v281 = vsub.s32 0, %v280
    %v282 = vrot.slane %v277, %v281
    %v283 = vlaneseq
    %v284 = vshrl.u32 %v283, 7
    %v285 = vsub.s32 1, %v284
    %v286 = vrot.slane %v277, %v285
    %v305 = vunpack.c.l.b16 %v261
    %v306 = vunpack.c.h.b16 %v261
    %v307 = vunpack.c.l.b16 %v262
    %v308 = vunpack.c.h.b16 %v262
    %v309 = vunpack.c.l.b16 %v263
    %v310 = vunpack.c.h.b16 %v263
    %v311 = vunpack.c.l.b16 %v264
    %v312 = vunpack.c.h.b16 %v264
    %v313 = vunpack.c.l.b16 %v265
    %v314 = vunpack.c.h.b16 %v265
    %v315 = vunpack.c.l.b16 %v266
    %v316 = vunpack.c.h.b16 %v266
    %v317 = vunpack.c.l.b16 %v267
    %v318 = vunpack.c.h.b16 %v267
    %v319 = vunpack.c.l.b16 %v268
    %v320 = vunpack.c.h.b16 %v268
    %v321 = vunpack.c.l.b16 %v269
    %v322 = vunpack.c.h.b16 %v269
    %v323 = vunpack.c.l.b16 %v270
    %v324 = vunpack.c.h.b16 %v270
    %v325 = vunpack.c.l.b16 %v271
    %v326 = vunpack.c.h.b16 %v271
    %v327 = vunpack.c.l.b16 %v272
    %v328 = vunpack.c.h.b16 %v272
    %v329 = vunpack.c.l.b16 %v273
    %v330 = vunpack.c.h.b16 %v273
    %v331 = vunpack.c.l.b16 %v274
    %v332 = vunpack.c.h.b16 %v274
    %v333 = vunpack.c.l.b16 %v275
    %v334 = vunpack.c.h.b16 %v275
    %v335 = vunpack.c.l.b16 %v276
    %v336 = vunpack.c.h.b16 %v276
    %v337 = vpack.c.b16 %v307, %v305
    %v338 = vpack.c.b16 %v308, %v306
    %v339 = vpack.c.b16 %v311, %v309
    %v340 = vpack.c.b16 %v312, %v310
    %v341 = vpack.c.b16 %v315, %v313
    %v342 = vpack.c.b16 %v316, %v314
    %v343 = vpack.c.b16 %v319, %v317
    %v344 = vpack.c.b16 %v320, %v318
    %v345 = vpack.c.b16 %v323, %v321
    %v346 = vpack.c.b16 %v324, %v322
    %v347 = vpack.c.b16 %v327, %v325
    %v348 = vpack.c.b16 %v328, %v326
    %v349 = vpack.c.b16 %v331, %v329
    %v350 = vpack.c.b16 %v332, %v330
    %v351 = vpack.c.b16 %v335, %v333
    %v352 = vpack.c.b16 %v336, %v334
    %369 = vmatprep.subr.bf16.mxu0 %v352
    %370 = vmatpush1.bf16.msra.mxu0 %v351
    %371 = vmatprep.subr.bf16.mxu0 %v350
    %372 = vmatpush1.bf16.msra.mxu0 %v349
    %373 = vmatprep.subr.bf16.mxu0 %v348
    %374 = vmatpush1.bf16.msra.mxu0 %v347
    %375 = vmatprep.subr.bf16.mxu0 %v346
    %376 = vmatpush1.bf16.msra.mxu0 %v345
    %377 = vmatprep.subr.bf16.mxu0 %v344
    %378 = vmatpush1.bf16.msra.mxu0 %v343
    %379 = vmatprep.subr.bf16.mxu0 %v342
    %380 = vmatpush1.bf16.msra.mxu0 %v341
    %381 = vmatprep.subr.bf16.mxu0 %v340
    %382 = vmatpush1.bf16.msra.mxu0 %v339
    %383 = vmatprep.subr.bf16.mxu0 %v338
    %384 = vmatpush1.bf16.msra.mxu0 %v337
    %385 = vmatprep.subr.bf16.mxu0 0
    %386 = vmatpush2.bf16.msra.mxu0 0
    %387 = vmatprep.subr.bf16.mxu0 0
    %388 = vmatpush2.bf16.msra.mxu0 0
    %389 = vmatprep.subr.bf16.mxu0 0
    %390 = vmatpush2.bf16.msra.mxu0 0
    %391 = vmatprep.subr.bf16.mxu0 0
    %392 = vmatpush2.bf16.msra.mxu0 0
    %393 = vmatprep.subr.bf16.mxu0 0
    %394 = vmatpush2.bf16.msra.mxu0 0
    %395 = vmatprep.subr.bf16.mxu0 0
    %396 = vmatpush2.bf16.msra.mxu0 0
    %397 = vmatprep.subr.bf16.mxu0 0
    %398 = vmatpush2.bf16.msra.mxu0 0
    %399 = vmatprep.subr.bf16.mxu0 0
    %400 = vmatpush2.bf16.msra.mxu0 0
    %401 = vmatprep.mubr.bf16.mxu0 0
    %402 = vmatmul.mubr.bf16.gmra.mxu0 %v260
    %v403 = vpop.f32.mrf.mxu0
    %v404 = vadd.f32 %v282, %v403
    %v405 = vpop.f32.mrf.mxu0
    %v406 = vadd.f32 %v286, %v405
    %v407 = vpop.f32.mrf.mxu0
    %v408 = vadd.f32 %v282, %v407
    %v409 = vpop.f32.mrf.mxu0
    %v410 = vadd.f32 %v286, %v409
    %411 = vdwg.mxu0
    %v412 = vmax.f32 %v404, 0.0
    %v413 = vmax.f32 %v406, 0.0
    %v414 = vmax.f32 %v408, 0.0
    %v415 = vmax.f32 %v410, 0.0
    %v416 = vpack.c.bf16 %v414, %v412
    %v417 = vpack.c.bf16 %v415, %v413
    %v418 = vld [vmem:[#allocation8] sm:$0xff]
    %v419 = vld [vmem:[#allocation8 + $0x8] sm:$0xff]
    %v420 = vld [vmem:[#allocation8 + $0x10] sm:$0xff]
    %v421 = vld [vmem:[#allocation8 + $0x18] sm:$0xff]
    %v422 = vld [vmem:[#allocation8 + $0x20] sm:$0xff]
    %v423 = vld [vmem:[#allocation8 + $0x28] sm:$0xff]
    %v424 = vld [vmem:[#allocation8 + $0x30] sm:$0xff]
    %v425 = vld [vmem:[#allocation8 + $0x38] sm:$0xff]
    %v426 = vld [vmem:[#allocation8 + $0x40] sm:$0xff]
    %v427 = vld [vmem:[#allocation8 + $0x48] sm:$0xff]
    %v428 = vld [vmem:[#allocation8 + $0x50] sm:$0xff]
    %v429 = vld [vmem:[#allocation8 + $0x58] sm:$0xff]
    %v430 = vld [vmem:[#allocation8 + $0x60] sm:$0xff]
    %v431 = vld [vmem:[#allocation8 + $0x68] sm:$0xff]
    %v432 = vld [vmem:[#allocation8 + $0x70] sm:$0xff]
    %v433 = vld [vmem:[#allocation8 + $0x78] sm:$0xff]
    %v434 = vld [vmem:[#allocation8 + $0x80] sm:$0xff]
    %v435 = vld [vmem:[#allocation8 + $0x88] sm:$0xff]
    %v436 = vld [vmem:[#allocation8 + $0x90] sm:$0xff]
    %v437 = vld [vmem:[#allocation8 + $0x98] sm:$0xff]
    %v438 = vld [vmem:[#allocation8 + $0xa0] sm:$0xff]
    %v439 = vld [vmem:[#allocation8 + $0xa8] sm:$0xff]
    %v440 = vld [vmem:[#allocation8 + $0xb0] sm:$0xff]
    %v441 = vld [vmem:[#allocation8 + $0xb8] sm:$0xff]
    %v442 = vld [vmem:[#allocation8 + $0xc0] sm:$0xff]
    %v443 = vld [vmem:[#allocation8 + $0xc8] sm:$0xff]
    %v444 = vld [vmem:[#allocation8 + $0xd0] sm:$0xff]
    %v445 = vld [vmem:[#allocation8 + $0xd8] sm:$0xff]
    %v446 = vld [vmem:[#allocation8 + $0xe0] sm:$0xff]
    %v447 = vld [vmem:[#allocation8 + $0xe8] sm:$0xff]
    %v448 = vld [vmem:[#allocation8 + $0xf0] sm:$0xff]
    %v449 = vld [vmem:[#allocation8 + $0xf8] sm:$0xff]
    %v450 = vld [vmem:[#allocation8 + $0x100] sm:$0xff]
    %v451 = vld [vmem:[#allocation8 + $0x108] sm:$0xff]
    %v452 = vld [vmem:[#allocation8 + $0x110] sm:$0xff]
    %v453 = vld [vmem:[#allocation8 + $0x118] sm:$0xff]
    %v454 = vld [vmem:[#allocation8 + $0x120] sm:$0xff]
    %v455 = vld [vmem:[#allocation8 + $0x128] sm:$0xff]
    %v456 = vld [vmem:[#allocation8 + $0x130] sm:$0xff]
    %v457 = vld [vmem:[#allocation8 + $0x138] sm:$0xff]
    %v458 = vld [vmem:[#allocation8 + $0x140] sm:$0xff]
    %v459 = vld [vmem:[#allocation8 + $0x148] sm:$0xff]
    %v460 = vld [vmem:[#allocation8 + $0x150] sm:$0xff]
    %v461 = vld [vmem:[#allocation8 + $0x158] sm:$0xff]
    %v462 = vld [vmem:[#allocation8 + $0x160] sm:$0xff]
    %v463 = vld [vmem:[#allocation8 + $0x168] sm:$0xff]
    %v464 = vld [vmem:[#allocation8 + $0x170] sm:$0xff]
    %v465 = vld [vmem:[#allocation8 + $0x178] sm:$0xff]
    %v466 = vld [vmem:[#allocation8 + $0x180] sm:$0xff]
    %v467 = vld [vmem:[#allocation8 + $0x188] sm:$0xff]
    %v468 = vld [vmem:[#allocation8 + $0x190] sm:$0xff]
    %v469 = vld [vmem:[#allocation8 + $0x198] sm:$0xff]
    %v470 = vld [vmem:[#allocation8 + $0x1a0] sm:$0xff]
    %v471 = vld [vmem:[#allocation8 + $0x1a8] sm:$0xff]
    %v472 = vld [vmem:[#allocation8 + $0x1b0] sm:$0xff]
    %v473 = vld [vmem:[#allocation8 + $0x1b8] sm:$0xff]
    %v474 = vld [vmem:[#allocation8 + $0x1c0] sm:$0xff]
    %v475 = vld [vmem:[#allocation8 + $0x1c8] sm:$0xff]
    %v476 = vld [vmem:[#allocation8 + $0x1d0] sm:$0xff]
    %v477 = vld [vmem:[#allocation8 + $0x1d8] sm:$0xff]
    %v478 = vld [vmem:[#allocation8 + $0x1e0] sm:$0xff]
    %v479 = vld [vmem:[#allocation8 + $0x1e8] sm:$0xff]
    %v480 = vld [vmem:[#allocation8 + $0x1f0] sm:$0xff]
    %v481 = vld [vmem:[#allocation8 + $0x1f8] sm:$0xff]
    %v482 = vld [vmem:[%s6] sm:$0xf]
    %v484 = vlaneseq
    %v485 = vshrl.u32 %v484, 7
    %v486 = vsub.s32 0, %v485
    %v487 = vrot.slane %v482, %v486
    %v488 = vlaneseq
    %v489 = vshrl.u32 %v488, 7
    %v490 = vsub.s32 1, %v489
    %v491 = vrot.slane %v482, %v490
    %v492 = vlaneseq
    %v493 = vshrl.u32 %v492, 7
    %v494 = vsub.s32 2, %v493
    %v495 = vrot.slane %v482, %v494
    %v496 = vlaneseq
    %v497 = vshrl.u32 %v496, 7
    %v498 = vsub.s32 3, %v497
    %v499 = vrot.slane %v482, %v498
    %v568 = vunpack.c.l.b16 %v418
    %v569 = vunpack.c.h.b16 %v418
    %v570 = vunpack.c.l.b16 %v419
    %v571 = vunpack.c.h.b16 %v419
    %v572 = vunpack.c.l.b16 %v420
    %v573 = vunpack.c.h.b16 %v420
    %v574 = vunpack.c.l.b16 %v421
    %v575 = vunpack.c.h.b16 %v421
    %v576 = vunpack.c.l.b16 %v422
    %v577 = vunpack.c.h.b16 %v422
    %v578 = vunpack.c.l.b16 %v423
    %v579 = vunpack.c.h.b16 %v423
    %v580 = vunpack.c.l.b16 %v424
    %v581 = vunpack.c.h.b16 %v424
    %v582 = vunpack.c.l.b16 %v425
    %v583 = vunpack.c.h.b16 %v425
    %v584 = vunpack.c.l.b16 %v426
    %v585 = vunpack.c.h.b16 %v426
    %v586 = vunpack.c.l.b16 %v427
    %v587 = vunpack.c.h.b16 %v427
    %v588 = vunpack.c.l.b16 %v428
    %v589 = vunpack.c.h.b16 %v428
    %v590 = vunpack.c.l.b16 %v429
    %v591 = vunpack.c.h.b16 %v429
    %v592 = vunpack.c.l.b16 %v430
    %v593 = vunpack.c.h.b16 %v430
    %v594 = vunpack.c.l.b16 %v431
    %v595 = vunpack.c.h.b16 %v431
    %v596 = vunpack.c.l.b16 %v432
    %v597 = vunpack.c.h.b16 %v432
    %v598 = vunpack.c.l.b16 %v433
    %v599 = vunpack.c.h.b16 %v433
    %v600 = vunpack.c.l.b16 %v434
    %v601 = vunpack.c.h.b16 %v434
    %v602 = vunpack.c.l.b16 %v435
    %v603 = vunpack.c.h.b16 %v435
    %v604 = vunpack.c.l.b16 %v436
    %v605 = vunpack.c.h.b16 %v436
    %v606 = vunpack.c.l.b16 %v437
    %v607 = vunpack.c.h.b16 %v437
    %v608 = vunpack.c.l.b16 %v438
    %v609 = vunpack.c.h.b16 %v438
    %v610 = vunpack.c.l.b16 %v439
    %v611 = vunpack.c.h.b16 %v439
    %v612 = vunpack.c.l.b16 %v440
    %v613 = vunpack.c.h.b16 %v440
    %v614 = vunpack.c.l.b16 %v441
    %v615 = vunpack.c.h.b16 %v441
    %v616 = vunpack.c.l.b16 %v442
    %v617 = vunpack.c.h.b16 %v442
    %v618 = vunpack.c.l.b16 %v443
    %v619 = vunpack.c.h.b16 %v443
    %v620 = vunpack.c.l.b16 %v444
    %v621 = vunpack.c.h.b16 %v444
    %v622 = vunpack.c.l.b16 %v445
    %v623 = vunpack.c.h.b16 %v445
    %v624 = vunpack.c.l.b16 %v446
    %v625 = vunpack.c.h.b16 %v446
    %v626 = vunpack.c.l.b16 %v447
    %v627 = vunpack.c.h.b16 %v447
    %v628 = vunpack.c.l.b16 %v448
    %v629 = vunpack.c.h.b16 %v448
    %v630 = vunpack.c.l.b16 %v449
    %v631 = vunpack.c.h.b16 %v449
    %v632 = vunpack.c.l.b16 %v450
    %v633 = vunpack.c.h.b16 %v450
    %v634 = vunpack.c.l.b16 %v451
    %v635 = vunpack.c.h.b16 %v451
    %v636 = vunpack.c.l.b16 %v452
    %v637 = vunpack.c.h.b16 %v452
    %v638 = vunpack.c.l.b16 %v453
    %v639 = vunpack.c.h.b16 %v453
    %v640 = vunpack.c.l.b16 %v454
    %v641 = vunpack.c.h.b16 %v454
    %v642 = vunpack.c.l.b16 %v455
    %v643 = vunpack.c.h.b16 %v455
    %v644 = vunpack.c.l.b16 %v456
    %v645 = vunpack.c.h.b16 %v456
    %v646 = vunpack.c.l.b16 %v457
    %v647 = vunpack.c.h.b16 %v457
    %v648 = vunpack.c.l.b16 %v458
    %v649 = vunpack.c.h.b16 %v458
    %v650 = vunpack.c.l.b16 %v459
    %v651 = vunpack.c.h.b16 %v459
    %v652 = vunpack.c.l.b16 %v460
    %v653 = vunpack.c.h.b16 %v460
    %v654 = vunpack.c.l.b16 %v461
    %v655 = vunpack.c.h.b16 %v461
    %v656 = vunpack.c.l.b16 %v462
    %v657 = vunpack.c.h.b16 %v462
    %v658 = vunpack.c.l.b16 %v463
    %v659 = vunpack.c.h.b16 %v463
    %v660 = vunpack.c.l.b16 %v464
    %v661 = vunpack.c.h.b16 %v464
    %v662 = vunpack.c.l.b16 %v465
    %v663 = vunpack.c.h.b16 %v465
    %v664 = vunpack.c.l.b16 %v466
    %v665 = vunpack.c.h.b16 %v466
    %v666 = vunpack.c.l.b16 %v467
    %v667 = vunpack.c.h.b16 %v467
    %v668 = vunpack.c.l.b16 %v468
    %v669 = vunpack.c.h.b16 %v468
    %v670 = vunpack.c.l.b16 %v469
    %v671 = vunpack.c.h.b16 %v469
    %v672 = vunpack.c.l.b16 %v470
    %v673 = vunpack.c.h.b16 %v470
    %v674 = vunpack.c.l.b16 %v471
    %v675 = vunpack.c.h.b16 %v471
    %v676 = vunpack.c.l.b16 %v472
    %v677 = vunpack.c.h.b16 %v472
    %v678 = vunpack.c.l.b16 %v473
    %v679 = vunpack.c.h.b16 %v473
    %v680 = vunpack.c.l.b16 %v474
    %v681 = vunpack.c.h.b16 %v474
    %v682 = vunpack.c.l.b16 %v475
    %v683 = vunpack.c.h.b16 %v475
    %v684 = vunpack.c.l.b16 %v476
    %v685 = vunpack.c.h.b16 %v476
    %v686 = vunpack.c.l.b16 %v477
    %v687 = vunpack.c.h.b16 %v477
    %v688 = vunpack.c.l.b16 %v478
    %v689 = vunpack.c.h.b16 %v478
    %v690 = vunpack.c.l.b16 %v479
    %v691 = vunpack.c.h.b16 %v479
    %v692 = vunpack.c.l.b16 %v480
    %v693 = vunpack.c.h.b16 %v480
    %v694 = vunpack.c.l.b16 %v481
    %v695 = vunpack.c.h.b16 %v481
    %v696 = vpack.c.b16 %v572, %v568
    %v697 = vpack.c.b16 %v573, %v569
    %v698 = vpack.c.b16 %v574, %v570
    %v699 = vpack.c.b16 %v575, %v571
    %v700 = vpack.c.b16 %v580, %v576
    %v701 = vpack.c.b16 %v581, %v577
    %v702 = vpack.c.b16 %v582, %v578
    %v703 = vpack.c.b16 %v583, %v579
    %v704 = vpack.c.b16 %v588, %v584
    %v705 = vpack.c.b16 %v589, %v585
    %v706 = vpack.c.b16 %v590, %v586
    %v707 = vpack.c.b16 %v591, %v587
    %v708 = vpack.c.b16 %v596, %v592
    %v709 = vpack.c.b16 %v597, %v593
    %v710 = vpack.c.b16 %v598, %v594
    %v711 = vpack.c.b16 %v599, %v595
    %v712 = vpack.c.b16 %v604, %v600
    %v713 = vpack.c.b16 %v605, %v601
    %v714 = vpack.c.b16 %v606, %v602
    %v715 = vpack.c.b16 %v607, %v603
    %v716 = vpack.c.b16 %v612, %v608
    %v717 = vpack.c.b16 %v613, %v609
    %v718 = vpack.c.b16 %v614, %v610
    %v719 = vpack.c.b16 %v615, %v611
    %v720 = vpack.c.b16 %v620, %v616
    %v721 = vpack.c.b16 %v621, %v617
    %v722 = vpack.c.b16 %v622, %v618
    %v723 = vpack.c.b16 %v623, %v619
    %v724 = vpack.c.b16 %v628, %v624
    %v725 = vpack.c.b16 %v629, %v625
    %v726 = vpack.c.b16 %v630, %v626
    %v727 = vpack.c.b16 %v631, %v627
    %v728 = vpack.c.b16 %v636, %v632
    %v729 = vpack.c.b16 %v637, %v633
    %v730 = vpack.c.b16 %v638, %v634
    %v731 = vpack.c.b16 %v639, %v635
    %v732 = vpack.c.b16 %v644, %v640
    %v733 = vpack.c.b16 %v645, %v641
    %v734 = vpack.c.b16 %v646, %v642
    %v735 = vpack.c.b16 %v647, %v643
    %v736 = vpack.c.b16 %v652, %v648
    %v737 = vpack.c.b16 %v653, %v649
    %v738 = vpack.c.b16 %v654, %v650
    %v739 = vpack.c.b16 %v655, %v651
    %v740 = vpack.c.b16 %v660, %v656
    %v741 = vpack.c.b16 %v661, %v657
    %v742 = vpack.c.b16 %v662, %v658
    %v743 = vpack.c.b16 %v663, %v659
    %v744 = vpack.c.b16 %v668, %v664
    %v745 = vpack.c.b16 %v669, %v665
    %v746 = vpack.c.b16 %v670, %v666
    %v747 = vpack.c.b16 %v671, %v667
    %v748 = vpack.c.b16 %v676, %v672
    %v749 = vpack.c.b16 %v677, %v673
    %v750 = vpack.c.b16 %v678, %v674
    %v751 = vpack.c.b16 %v679, %v675
    %v752 = vpack.c.b16 %v684, %v680
    %v753 = vpack.c.b16 %v685, %v681
    %v754 = vpack.c.b16 %v686, %v682
    %v755 = vpack.c.b16 %v687, %v683
    %v756 = vpack.c.b16 %v692, %v688
    %v757 = vpack.c.b16 %v693, %v689
    %v758 = vpack.c.b16 %v694, %v690
    %v759 = vpack.c.b16 %v695, %v691
    %824 = vmatprep.subr.bf16.mxu0 %v725
    %825 = vmatpush1.bf16.msra.mxu0 %v724
    %826 = vmatprep.subr.bf16.mxu0 %v721
    %827 = vmatpush1.bf16.msra.mxu0 %v720
    %828 = vmatprep.subr.bf16.mxu0 %v717
    %829 = vmatpush1.bf16.msra.mxu0 %v716
    %830 = vmatprep.subr.bf16.mxu0 %v713
    %831 = vmatpush1.bf16.msra.mxu0 %v712
    %832 = vmatprep.subr.bf16.mxu0 %v709
    %833 = vmatpush1.bf16.msra.mxu0 %v708
    %834 = vmatprep.subr.bf16.mxu0 %v705
    %835 = vmatpush1.bf16.msra.mxu0 %v704
    %836 = vmatprep.subr.bf16.mxu0 %v701
    %837 = vmatpush1.bf16.msra.mxu0 %v700
    %838 = vmatprep.subr.bf16.mxu0 %v697
    %839 = vmatpush1.bf16.msra.mxu0 %v696
    %840 = vmatprep.subr.bf16.mxu0 %v757
    %841 = vmatpush2.bf16.msra.mxu0 %v756
    %842 = vmatprep.subr.bf16.mxu0 %v753
    %843 = vmatpush2.bf16.msra.mxu0 %v752
    %844 = vmatprep.subr.bf16.mxu0 %v749
    %845 = vmatpush2.bf16.msra.mxu0 %v748
    %846 = vmatprep.subr.bf16.mxu0 %v745
    %847 = vmatpush2.bf16.msra.mxu0 %v744
    %848 = vmatprep.subr.bf16.mxu0 %v741
    %849 = vmatpush2.bf16.msra.mxu0 %v740
    %850 = vmatprep.subr.bf16.mxu0 %v737
    %851 = vmatpush2.bf16.msra.mxu0 %v736
    %852 = vmatprep.subr.bf16.mxu0 %v733
    %853 = vmatpush2.bf16.msra.mxu0 %v732
    %854 = vmatprep.subr.bf16.mxu0 %v729
    %855 = vmatpush2.bf16.msra.mxu0 %v728
    %856 = vmatprep.mubr.bf16.mxu0 %v417
    %857 = vmatmul.mubr.bf16.gmra.mxu0 %v416
    %v858 = vpop.f32.mrf.mxu0
    %v859 = vadd.f32 %v487, %v858
    %v860 = vpop.f32.mrf.mxu0
    %v861 = vadd.f32 %v491, %v860
    %v862 = vpop.f32.mrf.mxu0
    %v863 = vadd.f32 %v487, %v862
    %v864 = vpop.f32.mrf.mxu0
    %v865 = vadd.f32 %v491, %v864
    %866 = vdwg.mxu0
    %867 = vmatprep.subr.bf16.mxu0 %v727
    %868 = vmatpush1.bf16.msra.mxu0 %v726
    %869 = vmatprep.subr.bf16.mxu0 %v723
    %870 = vmatpush1.bf16.msra.mxu0 %v722
    %871 = vmatprep.subr.bf16.mxu0 %v719
    %872 = vmatpush1.bf16.msra.mxu0 %v718
    %873 = vmatprep.subr.bf16.mxu0 %v715
    %874 = vmatpush1.bf16.msra.mxu0 %v714
    %875 = vmatprep.subr.bf16.mxu0 %v711
    %876 = vmatpush1.bf16.msra.mxu0 %v710
    %877 = vmatprep.subr.bf16.mxu0 %v707
    %878 = vmatpush1.bf16.msra.mxu0 %v706
    %879 = vmatprep.subr.bf16.mxu0 %v703
    %880 = vmatpush1.bf16.msra.mxu0 %v702
    %881 = vmatprep.subr.bf16.mxu0 %v699
    %882 = vmatpush1.bf16.msra.mxu0 %v698
    %883 = vmatprep.subr.bf16.mxu0 %v759
    %884 = vmatpush2.bf16.msra.mxu0 %v758
    %885 = vmatprep.subr.bf16.mxu0 %v755
    %886 = vmatpush2.bf16.msra.mxu0 %v754
    %887 = vmatprep.subr.bf16.mxu0 %v751
    %888 = vmatpush2.bf16.msra.mxu0 %v750
    %889 = vmatprep.subr.bf16.mxu0 %v747
    %890 = vmatpush2.bf16.msra.mxu0 %v746
    %891 = vmatprep.subr.bf16.mxu0 %v743
    %892 = vmatpush2.bf16.msra.mxu0 %v742
    %893 = vmatprep.subr.bf16.mxu0 %v739
    %894 = vmatpush2.bf16.msra.mxu0 %v738
    %895 = vmatprep.subr.bf16.mxu0 %v735
    %896 = vmatpush2.bf16.msra.mxu0 %v734
    %897 = vmatprep.subr.bf16.mxu0 %v731
    %898 = vmatpush2.bf16.msra.mxu0 %v730
    %899 = vmatprep.mubr.bf16.mxu0 %v417
    %900 = vmatmul.mubr.bf16.gmra.mxu0 %v416
    %v901 = vpop.f32.mrf.mxu0
    %v902 = vadd.f32 %v495, %v901
    %v903 = vpop.f32.mrf.mxu0
    %v904 = vadd.f32 %v499, %v903
    %v905 = vpop.f32.mrf.mxu0
    %v906 = vadd.f32 %v495, %v905
    %v907 = vpop.f32.mrf.mxu0
    %v908 = vadd.f32 %v499, %v907
    %909 = vdwg.mxu0
    %v910 = vmax.f32 %v859, 0.0
    %v911 = vmax.f32 %v861, 0.0
    %v912 = vmax.f32 %v902, 0.0
    %v913 = vmax.f32 %v904, 0.0
    %v914 = vmax.f32 %v863, 0.0
    %v915 = vmax.f32 %v865, 0.0
    %v916 = vmax.f32 %v906, 0.0
    %v917 = vmax.f32 %v908, 0.0
    %v918 = vpack.c.bf16 %v914, %v910
    %v919 = vpack.c.bf16 %v915, %v911
    %v920 = vpack.c.bf16 %v916, %v912
    %v921 = vpack.c.bf16 %v917, %v913
    %v922 = vld [vmem:[#allocation10] sm:$0xff]
    %v923 = vld [vmem:[#allocation10 + $0x8] sm:$0xff]
    %v924 = vld [vmem:[#allocation10 + $0x10] sm:$0xff]
    %v925 = vld [vmem:[#allocation10 + $0x18] sm:$0xff]
    %v926 = vld [vmem:[#allocation10 + $0x20] sm:$0xff]
    %v927 = vld [vmem:[#allocation10 + $0x28] sm:$0xff]
    %v928 = vld [vmem:[#allocation10 + $0x30] sm:$0xff]
    %v929 = vld [vmem:[#allocation10 + $0x38] sm:$0xff]
    %v930 = vld [vmem:[#allocation10 + $0x40] sm:$0xff]
    %v931 = vld [vmem:[#allocation10 + $0x48] sm:$0xff]
    %v932 = vld [vmem:[#allocation10 + $0x50] sm:$0xff]
    %v933 = vld [vmem:[#allocation10 + $0x58] sm:$0xff]
    %v934 = vld [vmem:[#allocation10 + $0x60] sm:$0xff]
    %v935 = vld [vmem:[#allocation10 + $0x68] sm:$0xff]
    %v936 = vld [vmem:[#allocation10 + $0x70] sm:$0xff]
    %v937 = vld [vmem:[#allocation10 + $0x78] sm:$0xff]
    %v938 = vld [vmem:[#allocation10 + $0x80] sm:$0xff]
    %v939 = vld [vmem:[#allocation10 + $0x88] sm:$0xff]
    %v940 = vld [vmem:[#allocation10 + $0x90] sm:$0xff]
    %v941 = vld [vmem:[#allocation10 + $0x98] sm:$0xff]
    %v942 = vld [vmem:[#allocation10 + $0xa0] sm:$0xff]
    %v943 = vld [vmem:[#allocation10 + $0xa8] sm:$0xff]
    %v944 = vld [vmem:[#allocation10 + $0xb0] sm:$0xff]
    %v945 = vld [vmem:[#allocation10 + $0xb8] sm:$0xff]
    %v946 = vld [vmem:[#allocation10 + $0xc0] sm:$0xff]
    %v947 = vld [vmem:[#allocation10 + $0xc8] sm:$0xff]
    %v948 = vld [vmem:[#allocation10 + $0xd0] sm:$0xff]
    %v949 = vld [vmem:[#allocation10 + $0xd8] sm:$0xff]
    %v950 = vld [vmem:[#allocation10 + $0xe0] sm:$0xff]
    %v951 = vld [vmem:[#allocation10 + $0xe8] sm:$0xff]
    %v952 = vld [vmem:[#allocation10 + $0xf0] sm:$0xff]
    %v953 = vld [vmem:[#allocation10 + $0xf8] sm:$0xff]
    %v954 = vld [vmem:[#allocation10 + $0x100] sm:$0xff]
    %v955 = vld [vmem:[#allocation10 + $0x108] sm:$0xff]
    %v956 = vld [vmem:[#allocation10 + $0x110] sm:$0xff]
    %v957 = vld [vmem:[#allocation10 + $0x118] sm:$0xff]
    %v958 = vld [vmem:[#allocation10 + $0x120] sm:$0xff]
    %v959 = vld [vmem:[#allocation10 + $0x128] sm:$0xff]
    %v960 = vld [vmem:[#allocation10 + $0x130] sm:$0xff]
    %v961 = vld [vmem:[#allocation10 + $0x138] sm:$0xff]
    %v962 = vld [vmem:[#allocation10 + $0x140] sm:$0xff]
    %v963 = vld [vmem:[#allocation10 + $0x148] sm:$0xff]
    %v964 = vld [vmem:[#allocation10 + $0x150] sm:$0xff]
    %v965 = vld [vmem:[#allocation10 + $0x158] sm:$0xff]
    %v966 = vld [vmem:[#allocation10 + $0x160] sm:$0xff]
    %v967 = vld [vmem:[#allocation10 + $0x168] sm:$0xff]
    %v968 = vld [vmem:[#allocation10 + $0x170] sm:$0xff]
    %v969 = vld [vmem:[#allocation10 + $0x178] sm:$0xff]
    %v970 = vld [vmem:[#allocation10 + $0x180] sm:$0xff]
    %v971 = vld [vmem:[#allocation10 + $0x188] sm:$0xff]
    %v972 = vld [vmem:[#allocation10 + $0x190] sm:$0xff]
    %v973 = vld [vmem:[#allocation10 + $0x198] sm:$0xff]
    %v974 = vld [vmem:[#allocation10 + $0x1a0] sm:$0xff]
    %v975 = vld [vmem:[#allocation10 + $0x1a8] sm:$0xff]
    %v976 = vld [vmem:[#allocation10 + $0x1b0] sm:$0xff]
    %v977 = vld [vmem:[#allocation10 + $0x1b8] sm:$0xff]
    %v978 = vld [vmem:[#allocation10 + $0x1c0] sm:$0xff]
    %v979 = vld [vmem:[#allocation10 + $0x1c8] sm:$0xff]
    %v980 = vld [vmem:[#allocation10 + $0x1d0] sm:$0xff]
    %v981 = vld [vmem:[#allocation10 + $0x1d8] sm:$0xff]
    %v982 = vld [vmem:[#allocation10 + $0x1e0] sm:$0xff]
    %v983 = vld [vmem:[#allocation10 + $0x1e8] sm:$0xff]
    %v984 = vld [vmem:[#allocation10 + $0x1f0] sm:$0xff]
    %v985 = vld [vmem:[#allocation10 + $0x1f8] sm:$0xff]
    %v986 = vld [vmem:[%s8] sm:$0x3]
    %v988 = vlaneseq
    %v989 = vshrl.u32 %v988, 7
    %v990 = vsub.s32 0, %v989
    %v991 = vrot.slane %v986, %v990
    %v992 = vlaneseq
    %v993 = vshrl.u32 %v992, 7
    %v994 = vsub.s32 1, %v993
    %v995 = vrot.slane %v986, %v994
    %v1062 = vunpack.c.l.b16 %v922
    %v1063 = vunpack.c.h.b16 %v922
    %v1064 = vunpack.c.l.b16 %v923
    %v1065 = vunpack.c.h.b16 %v923
    %v1066 = vunpack.c.l.b16 %v924
    %v1067 = vunpack.c.h.b16 %v924
    %v1068 = vunpack.c.l.b16 %v925
    %v1069 = vunpack.c.h.b16 %v925
    %v1070 = vunpack.c.l.b16 %v926
    %v1071 = vunpack.c.h.b16 %v926
    %v1072 = vunpack.c.l.b16 %v927
    %v1073 = vunpack.c.h.b16 %v927
    %v1074 = vunpack.c.l.b16 %v928
    %v1075 = vunpack.c.h.b16 %v928
    %v1076 = vunpack.c.l.b16 %v929
    %v1077 = vunpack.c.h.b16 %v929
    %v1078 = vunpack.c.l.b16 %v930
    %v1079 = vunpack.c.h.b16 %v930
    %v1080 = vunpack.c.l.b16 %v931
    %v1081 = vunpack.c.h.b16 %v931
    %v1082 = vunpack.c.l.b16 %v932
    %v1083 = vunpack.c.h.b16 %v932
    %v1084 = vunpack.c.l.b16 %v933
    %v1085 = vunpack.c.h.b16 %v933
    %v1086 = vunpack.c.l.b16 %v934
    %v1087 = vunpack.c.h.b16 %v934
    %v1088 = vunpack.c.l.b16 %v935
    %v1089 = vunpack.c.h.b16 %v935
    %v1090 = vunpack.c.l.b16 %v936
    %v1091 = vunpack.c.h.b16 %v936
    %v1092 = vunpack.c.l.b16 %v937
    %v1093 = vunpack.c.h.b16 %v937
    %v1094 = vunpack.c.l.b16 %v938
    %v1095 = vunpack.c.h.b16 %v938
    %v1096 = vunpack.c.l.b16 %v939
    %v1097 = vunpack.c.h.b16 %v939
    %v1098 = vunpack.c.l.b16 %v940
    %v1099 = vunpack.c.h.b16 %v940
    %v1100 = vunpack.c.l.b16 %v941
    %v1101 = vunpack.c.h.b16 %v941
    %v1102 = vunpack.c.l.b16 %v942
    %v1103 = vunpack.c.h.b16 %v942
    %v1104 = vunpack.c.l.b16 %v943
    %v1105 = vunpack.c.h.b16 %v943
    %v1106 = vunpack.c.l.b16 %v944
    %v1107 = vunpack.c.h.b16 %v944
    %v1108 = vunpack.c.l.b16 %v945
    %v1109 = vunpack.c.h.b16 %v945
    %v1110 = vunpack.c.l.b16 %v946
    %v1111 = vunpack.c.h.b16 %v946
    %v1112 = vunpack.c.l.b16 %v947
    %v1113 = vunpack.c.h.b16 %v947
    %v1114 = vunpack.c.l.b16 %v948
    %v1115 = vunpack.c.h.b16 %v948
    %v1116 = vunpack.c.l.b16 %v949
    %v1117 = vunpack.c.h.b16 %v949
    %v1118 = vunpack.c.l.b16 %v950
    %v1119 = vunpack.c.h.b16 %v950
    %v1120 = vunpack.c.l.b16 %v951
    %v1121 = vunpack.c.h.b16 %v951
    %v1122 = vunpack.c.l.b16 %v952
    %v1123 = vunpack.c.h.b16 %v952
    %v1124 = vunpack.c.l.b16 %v953
    %v1125 = vunpack.c.h.b16 %v953
    %v1126 = vunpack.c.l.b16 %v954
    %v1127 = vunpack.c.h.b16 %v954
    %v1128 = vunpack.c.l.b16 %v955
    %v1129 = vunpack.c.h.b16 %v955
    %v1130 = vunpack.c.l.b16 %v956
    %v1131 = vunpack.c.h.b16 %v956
    %v1132 = vunpack.c.l.b16 %v957
    %v1133 = vunpack.c.h.b16 %v957
    %v1134 = vunpack.c.l.b16 %v958
    %v1135 = vunpack.c.h.b16 %v958
    %v1136 = vunpack.c.l.b16 %v959
    %v1137 = vunpack.c.h.b16 %v959
    %v1138 = vunpack.c.l.b16 %v960
    %v1139 = vunpack.c.h.b16 %v960
    %v1140 = vunpack.c.l.b16 %v961
    %v1141 = vunpack.c.h.b16 %v961
    %v1142 = vunpack.c.l.b16 %v962
    %v1143 = vunpack.c.h.b16 %v962
    %v1144 = vunpack.c.l.b16 %v963
    %v1145 = vunpack.c.h.b16 %v963
    %v1146 = vunpack.c.l.b16 %v964
    %v1147 = vunpack.c.h.b16 %v964
    %v1148 = vunpack.c.l.b16 %v965
    %v1149 = vunpack.c.h.b16 %v965
    %v1150 = vunpack.c.l.b16 %v966
    %v1151 = vunpack.c.h.b16 %v966
    %v1152 = vunpack.c.l.b16 %v967
    %v1153 = vunpack.c.h.b16 %v967
    %v1154 = vunpack.c.l.b16 %v968
    %v1155 = vunpack.c.h.b16 %v968
    %v1156 = vunpack.c.l.b16 %v969
    %v1157 = vunpack.c.h.b16 %v969
    %v1158 = vunpack.c.l.b16 %v970
    %v1159 = vunpack.c.h.b16 %v970
    %v1160 = vunpack.c.l.b16 %v971
    %v1161 = vunpack.c.h.b16 %v971
    %v1162 = vunpack.c.l.b16 %v972
    %v1163 = vunpack.c.h.b16 %v972
    %v1164 = vunpack.c.l.b16 %v973
    %v1165 = vunpack.c.h.b16 %v973
    %v1166 = vunpack.c.l.b16 %v974
    %v1167 = vunpack.c.h.b16 %v974
    %v1168 = vunpack.c.l.b16 %v975
    %v1169 = vunpack.c.h.b16 %v975
    %v1170 = vunpack.c.l.b16 %v976
    %v1171 = vunpack.c.h.b16 %v976
    %v1172 = vunpack.c.l.b16 %v977
    %v1173 = vunpack.c.h.b16 %v977
    %v1174 = vunpack.c.l.b16 %v978
    %v1175 = vunpack.c.h.b16 %v978
    %v1176 = vunpack.c.l.b16 %v979
    %v1177 = vunpack.c.h.b16 %v979
    %v1178 = vunpack.c.l.b16 %v980
    %v1179 = vunpack.c.h.b16 %v980
    %v1180 = vunpack.c.l.b16 %v981
    %v1181 = vunpack.c.h.b16 %v981
    %v1182 = vunpack.c.l.b16 %v982
    %v1183 = vunpack.c.h.b16 %v982
    %v1184 = vunpack.c.l.b16 %v983
    %v1185 = vunpack.c.h.b16 %v983
    %v1186 = vunpack.c.l.b16 %v984
    %v1187 = vunpack.c.h.b16 %v984
    %v1188 = vunpack.c.l.b16 %v985
    %v1189 = vunpack.c.h.b16 %v985
    %v1190 = vpack.c.b16 %v1064, %v1062
    %v1191 = vpack.c.b16 %v1065, %v1063
    %v1192 = vpack.c.b16 %v1068, %v1066
    %v1193 = vpack.c.b16 %v1069, %v1067
    %v1194 = vpack.c.b16 %v1072, %v1070
    %v1195 = vpack.c.b16 %v1073, %v1071
    %v1196 = vpack.c.b16 %v1076, %v1074
    %v1197 = vpack.c.b16 %v1077, %v1075
    %v1198 = vpack.c.b16 %v1080, %v1078
    %v1199 = vpack.c.b16 %v1081, %v1079
    %v1200 = vpack.c.b16 %v1084, %v1082
    %v1201 = vpack.c.b16 %v1085, %v1083
    %v1202 = vpack.c.b16 %v1088, %v1086
    %v1203 = vpack.c.b16 %v1089, %v1087
    %v1204 = vpack.c.b16 %v1092, %v1090
    %v1205 = vpack.c.b16 %v1093, %v1091
    %v1206 = vpack.c.b16 %v1096, %v1094
    %v1207 = vpack.c.b16 %v1097, %v1095
    %v1208 = vpack.c.b16 %v1100, %v1098
    %v1209 = vpack.c.b16 %v1101, %v1099
    %v1210 = vpack.c.b16 %v1104, %v1102
    %v1211 = vpack.c.b16 %v1105, %v1103
    %v1212 = vpack.c.b16 %v1108, %v1106
    %v1213 = vpack.c.b16 %v1109, %v1107
    %v1214 = vpack.c.b16 %v1112, %v1110
    %v1215 = vpack.c.b16 %v1113, %v1111
    %v1216 = vpack.c.b16 %v1116, %v1114
    %v1217 = vpack.c.b16 %v1117, %v1115
    %v1218 = vpack.c.b16 %v1120, %v1118
    %v1219 = vpack.c.b16 %v1121, %v1119
    %v1220 = vpack.c.b16 %v1124, %v1122
    %v1221 = vpack.c.b16 %v1125, %v1123
    %v1222 = vpack.c.b16 %v1128, %v1126
    %v1223 = vpack.c.b16 %v1129, %v1127
    %v1224 = vpack.c.b16 %v1132, %v1130
    %v1225 = vpack.c.b16 %v1133, %v1131
    %v1226 = vpack.c.b16 %v1136, %v1134
    %v1227 = vpack.c.b16 %v1137, %v1135
    %v1228 = vpack.c.b16 %v1140, %v1138
    %v1229 = vpack.c.b16 %v1141, %v1139
    %v1230 = vpack.c.b16 %v1144, %v1142
    %v1231 = vpack.c.b16 %v1145, %v1143
    %v1232 = vpack.c.b16 %v1148, %v1146
    %v1233 = vpack.c.b16 %v1149, %v1147
    %v1234 = vpack.c.b16 %v1152, %v1150
    %v1235 = vpack.c.b16 %v1153, %v1151
    %v1236 = vpack.c.b16 %v1156, %v1154
    %v1237 = vpack.c.b16 %v1157, %v1155
    %v1238 = vpack.c.b16 %v1160, %v1158
    %v1239 = vpack.c.b16 %v1161, %v1159
    %v1240 = vpack.c.b16 %v1164, %v1162
    %v1241 = vpack.c.b16 %v1165, %v1163
    %v1242 = vpack.c.b16 %v1168, %v1166
    %v1243 = vpack.c.b16 %v1169, %v1167
    %v1244 = vpack.c.b16 %v1172, %v1170
    %v1245 = vpack.c.b16 %v1173, %v1171
    %v1246 = vpack.c.b16 %v1176, %v1174
    %v1247 = vpack.c.b16 %v1177, %v1175
    %v1248 = vpack.c.b16 %v1180, %v1178
    %v1249 = vpack.c.b16 %v1181, %v1179
    %v1250 = vpack.c.b16 %v1184, %v1182
    %v1251 = vpack.c.b16 %v1185, %v1183
    %v1252 = vpack.c.b16 %v1188, %v1186
    %v1253 = vpack.c.b16 %v1189, %v1187
    %1318 = vmatprep.subr.bf16.mxu0 %v1205
    %1319 = vmatpush1.bf16.msra.mxu0 %v1204
    %1320 = vmatprep.subr.bf16.mxu0 %v1203
    %1321 = vmatpush1.bf16.msra.mxu0 %v1202
    %1322 = vmatprep.subr.bf16.mxu0 %v1201
    %1323 = vmatpush1.bf16.msra.mxu0 %v1200
    %1324 = vmatprep.subr.bf16.mxu0 %v1199
    %1325 = vmatpush1.bf16.msra.mxu0 %v1198
    %1326 = vmatprep.subr.bf16.mxu0 %v1197
    %1327 = vmatpush1.bf16.msra.mxu0 %v1196
    %1328 = vmatprep.subr.bf16.mxu0 %v1195
    %1329 = vmatpush1.bf16.msra.mxu0 %v1194
    %1330 = vmatprep.subr.bf16.mxu0 %v1193
    %1331 = vmatpush1.bf16.msra.mxu0 %v1192
    %1332 = vmatprep.subr.bf16.mxu0 %v1191
    %1333 = vmatpush1.bf16.msra.mxu0 %v1190
    %1334 = vmatprep.subr.bf16.mxu0 %v1221
    %1335 = vmatpush2.bf16.msra.mxu0 %v1220
    %1336 = vmatprep.subr.bf16.mxu0 %v1219
    %1337 = vmatpush2.bf16.msra.mxu0 %v1218
    %1338 = vmatprep.subr.bf16.mxu0 %v1217
    %1339 = vmatpush2.bf16.msra.mxu0 %v1216
    %1340 = vmatprep.subr.bf16.mxu0 %v1215
    %1341 = vmatpush2.bf16.msra.mxu0 %v1214
    %1342 = vmatprep.subr.bf16.mxu0 %v1213
    %1343 = vmatpush2.bf16.msra.mxu0 %v1212
    %1344 = vmatprep.subr.bf16.mxu0 %v1211
    %1345 = vmatpush2.bf16.msra.mxu0 %v1210
    %1346 = vmatprep.subr.bf16.mxu0 %v1209
    %1347 = vmatpush2.bf16.msra.mxu0 %v1208
    %1348 = vmatprep.subr.bf16.mxu0 %v1207
    %1349 = vmatpush2.bf16.msra.mxu0 %v1206
    %1350 = vmatprep.mubr.bf16.mxu0 %v919
    %1351 = vmatmul.mubr.bf16.gmra.mxu0 %v918
    %v1352 = vpop.f32.mrf.mxu0
    %v1353 = vadd.f32 %v991, %v1352
    %v1354 = vpop.f32.mrf.mxu0
    %v1355 = vadd.f32 %v995, %v1354
    %v1356 = vpop.f32.mrf.mxu0
    %v1357 = vadd.f32 %v991, %v1356
    %v1358 = vpop.f32.mrf.mxu0
    %v1359 = vadd.f32 %v995, %v1358
    %1360 = vdwg.mxu0
    %1361 = vmatprep.subr.bf16.mxu0 %v1237
    %1362 = vmatpush1.bf16.msra.mxu0 %v1236
    %1363 = vmatprep.subr.bf16.mxu0 %v1235
    %1364 = vmatpush1.bf16.msra.mxu0 %v1234
    %1365 = vmatprep.subr.bf16.mxu0 %v1233
    %1366 = vmatpush1.bf16.msra.mxu0 %v1232
    %1367 = vmatprep.subr.bf16.mxu0 %v1231
    %1368 = vmatpush1.bf16.msra.mxu0 %v1230
    %1369 = vmatprep.subr.bf16.mxu0 %v1229
    %1370 = vmatpush1.bf16.msra.mxu0 %v1228
    %1371 = vmatprep.subr.bf16.mxu0 %v1227
    %1372 = vmatpush1.bf16.msra.mxu0 %v1226
    %1373 = vmatprep.subr.bf16.mxu0 %v1225
    %1374 = vmatpush1.bf16.msra.mxu0 %v1224
    %1375 = vmatprep.subr.bf16.mxu0 %v1223
    %1376 = vmatpush1.bf16.msra.mxu0 %v1222
    %1377 = vmatprep.subr.bf16.mxu0 %v1253
    %1378 = vmatpush2.bf16.msra.mxu0 %v1252
    %1379 = vmatprep.subr.bf16.mxu0 %v1251
    %1380 = vmatpush2.bf16.msra.mxu0 %v1250
    %1381 = vmatprep.subr.bf16.mxu0 %v1249
    %1382 = vmatpush2.bf16.msra.mxu0 %v1248
    %1383 = vmatprep.subr.bf16.mxu0 %v1247
    %1384 = vmatpush2.bf16.msra.mxu0 %v1246
    %1385 = vmatprep.subr.bf16.mxu0 %v1245
    %1386 = vmatpush2.bf16.msra.mxu0 %v1244
    %1387 = vmatprep.subr.bf16.mxu0 %v1243
    %1388 = vmatpush2.bf16.msra.mxu0 %v1242
    %1389 = vmatprep.subr.bf16.mxu0 %v1241
    %1390 = vmatpush2.bf16.msra.mxu0 %v1240
    %1391 = vmatprep.subr.bf16.mxu0 %v1239
    %1392 = vmatpush2.bf16.msra.mxu0 %v1238
    %1393 = vmatprep.mubr.bf16.mxu0 %v921
    %1394 = vmatmul.mubr.bf16.gmra.mxu0 %v920
    %v1395 = vpop.f32.mrf.mxu0
    %v1396 = vadd.f32 %v1353, %v1395
    %v1397 = vpop.f32.mrf.mxu0
    %v1398 = vadd.f32 %v1355, %v1397
    %v1399 = vpop.f32.mrf.mxu0
    %v1400 = vadd.f32 %v1357, %v1399
    %v1401 = vpop.f32.mrf.mxu0
    %v1402 = vadd.f32 %v1359, %v1401
    %1403 = vdwg.mxu0
    %v1404 = vmax.f32 %v1396, 0.0
    %v1405 = vmax.f32 %v1398, 0.0
    %v1406 = vmax.f32 %v1400, 0.0
    %v1407 = vmax.f32 %v1402, 0.0
    %v1408 = vpack.c.bf16 %v1406, %v1404
    %v1409 = vpack.c.bf16 %v1407, %v1405
    %v1410 = vld [vmem:[#allocation11] sm:$0xf]
    %v1411 = vld [vmem:[#allocation11 + $0x4] sm:$0xf]
    %v1412 = vld [vmem:[#allocation11 + $0x8] sm:$0xf]
    %v1413 = vld [vmem:[#allocation11 + $0xc] sm:$0xf]
    %v1414 = vld [vmem:[#allocation11 + $0x10] sm:$0xf]
    %v1415 = vld [vmem:[#allocation11 + $0x14] sm:$0xf]
    %v1416 = vld [vmem:[#allocation11 + $0x18] sm:$0xf]
    %v1417 = vld [vmem:[#allocation11 + $0x1c] sm:$0xf]
    %v1418 = vld [vmem:[#allocation11 + $0x20] sm:$0xf]
    %v1419 = vld [vmem:[#allocation11 + $0x24] sm:$0xf]
    %v1420 = vld [vmem:[#allocation11 + $0x28] sm:$0xf]
    %v1421 = vld [vmem:[#allocation11 + $0x2c] sm:$0xf]
    %v1422 = vld [vmem:[#allocation11 + $0x30] sm:$0xf]
    %v1423 = vld [vmem:[#allocation11 + $0x34] sm:$0xf]
    %v1424 = vld [vmem:[#allocation11 + $0x38] sm:$0xf]
    %v1425 = vld [vmem:[#allocation11 + $0x3c] sm:$0xf]
    %v1426 = vld [vmem:[#allocation11 + $0x40] sm:$0xf]
    %v1427 = vld [vmem:[#allocation11 + $0x44] sm:$0xf]
    %v1428 = vld [vmem:[#allocation11 + $0x48] sm:$0xf]
    %v1429 = vld [vmem:[#allocation11 + $0x4c] sm:$0xf]
    %v1430 = vld [vmem:[#allocation11 + $0x50] sm:$0xf]
    %v1431 = vld [vmem:[#allocation11 + $0x54] sm:$0xf]
    %v1432 = vld [vmem:[#allocation11 + $0x58] sm:$0xf]
    %v1433 = vld [vmem:[#allocation11 + $0x5c] sm:$0xf]
    %v1434 = vld [vmem:[#allocation11 + $0x60] sm:$0xf]
    %v1435 = vld [vmem:[#allocation11 + $0x64] sm:$0xf]
    %v1436 = vld [vmem:[#allocation11 + $0x68] sm:$0xf]
    %v1437 = vld [vmem:[#allocation11 + $0x6c] sm:$0xf]
    %v1438 = vld [vmem:[#allocation11 + $0x70] sm:$0xf]
    %v1439 = vld [vmem:[#allocation11 + $0x74] sm:$0xf]
    %v1440 = vld [vmem:[#allocation11 + $0x78] sm:$0xf]
    %v1441 = vld [vmem:[#allocation11 + $0x7c] sm:$0xf]
    %v1442 = vld [vmem:[%s10] sm:$0x1]
    %v1444 = vlaneseq
    %v1445 = vshrl.u32 %v1444, 7
    %v1446 = vsub.s32 0, %v1445
    %v1447 = vrot.slane %v1442, %v1446
    %v1481 = vunpack.c.l.b16 %v1410
    %v1482 = vunpack.c.l.b16 %v1411
    %v1483 = vunpack.c.l.b16 %v1412
    %v1484 = vunpack.c.l.b16 %v1413
    %v1485 = vunpack.c.l.b16 %v1414
    %v1486 = vunpack.c.l.b16 %v1415
    %v1487 = vunpack.c.l.b16 %v1416
    %v1488 = vunpack.c.l.b16 %v1417
    %v1489 = vunpack.c.l.b16 %v1418
    %v1490 = vunpack.c.l.b16 %v1419
    %v1491 = vunpack.c.l.b16 %v1420
    %v1492 = vunpack.c.l.b16 %v1421
    %v1493 = vunpack.c.l.b16 %v1422
    %v1494 = vunpack.c.l.b16 %v1423
    %v1495 = vunpack.c.l.b16 %v1424
    %v1496 = vunpack.c.l.b16 %v1425
    %v1497 = vunpack.c.l.b16 %v1426
    %v1498 = vunpack.c.l.b16 %v1427
    %v1499 = vunpack.c.l.b16 %v1428
    %v1500 = vunpack.c.l.b16 %v1429
    %v1501 = vunpack.c.l.b16 %v1430
    %v1502 = vunpack.c.l.b16 %v1431
    %v1503 = vunpack.c.l.b16 %v1432
    %v1504 = vunpack.c.l.b16 %v1433
    %v1505 = vunpack.c.l.b16 %v1434
    %v1506 = vunpack.c.l.b16 %v1435
    %v1507 = vunpack.c.l.b16 %v1436
    %v1508 = vunpack.c.l.b16 %v1437
    %v1509 = vunpack.c.l.b16 %v1438
    %v1510 = vunpack.c.l.b16 %v1439
    %v1511 = vunpack.c.l.b16 %v1440
    %v1512 = vunpack.c.l.b16 %v1441
    %v1513 = vpack.c.b16 %v1482, %v1481
    %v1514 = vpack.c.b16 %v1484, %v1483
    %v1515 = vpack.c.b16 %v1486, %v1485
    %v1516 = vpack.c.b16 %v1488, %v1487
    %v1517 = vpack.c.b16 %v1490, %v1489
    %v1518 = vpack.c.b16 %v1492, %v1491
    %v1519 = vpack.c.b16 %v1494, %v1493
    %v1520 = vpack.c.b16 %v1496, %v1495
    %v1521 = vpack.c.b16 %v1498, %v1497
    %v1522 = vpack.c.b16 %v1500, %v1499
    %v1523 = vpack.c.b16 %v1502, %v1501
    %v1524 = vpack.c.b16 %v1504, %v1503
    %v1525 = vpack.c.b16 %v1506, %v1505
    %v1526 = vpack.c.b16 %v1508, %v1507
    %v1527 = vpack.c.b16 %v1510, %v1509
    %v1528 = vpack.c.b16 %v1512, %v1511
    %1545 = vmatprep.subr.bf16.mxu0 0
    %1546 = vmatpush1.bf16.msra.mxu0 %v1520
    %1547 = vmatprep.subr.bf16.mxu0 0
    %1548 = vmatpush1.bf16.msra.mxu0 %v1519
    %1549 = vmatprep.subr.bf16.mxu0 0
    %1550 = vmatpush1.bf16.msra.mxu0 %v1518
    %1551 = vmatprep.subr.bf16.mxu0 0
    %1552 = vmatpush1.bf16.msra.mxu0 %v1517
    %1553 = vmatprep.subr.bf16.mxu0 0
    %1554 = vmatpush1.bf16.msra.mxu0 %v1516
    %1555 = vmatprep.subr.bf16.mxu0 0
    %1556 = vmatpush1.bf16.msra.mxu0 %v1515
    %1557 = vmatprep.subr.bf16.mxu0 0
    %1558 = vmatpush1.bf16.msra.mxu0 %v1514
    %1559 = vmatprep.subr.bf16.mxu0 0
    %1560 = vmatpush1.bf16.msra.mxu0 %v1513
    %1561 = vmatprep.subr.bf16.mxu0 0
    %1562 = vmatpush2.bf16.msra.mxu0 %v1528
    %1563 = vmatprep.subr.bf16.mxu0 0
    %1564 = vmatpush2.bf16.msra.mxu0 %v1527
    %1565 = vmatprep.subr.bf16.mxu0 0
    %1566 = vmatpush2.bf16.msra.mxu0 %v1526
    %1567 = vmatprep.subr.bf16.mxu0 0
    %1568 = vmatpush2.bf16.msra.mxu0 %v1525
    %1569 = vmatprep.subr.bf16.mxu0 0
    %1570 = vmatpush2.bf16.msra.mxu0 %v1524
    %1571 = vmatprep.subr.bf16.mxu0 0
    %1572 = vmatpush2.bf16.msra.mxu0 %v1523
    %1573 = vmatprep.subr.bf16.mxu0 0
    %1574 = vmatpush2.bf16.msra.mxu0 %v1522
    %1575 = vmatprep.subr.bf16.mxu0 0
    %1576 = vmatpush2.bf16.msra.mxu0 %v1521
    %1577 = vmatprep.mubr.bf16.mxu0 %v1409
    %1578 = vmatmul.mubr.bf16.gmra.mxu0 %v1408
    %v1579 = vpop.f32.mrf.mxu0
    %v1580 = vadd.f32 %v1447, %v1579
    %v1581 = vpop.f32.mrf.mxu0
    %v1582 = vpop.f32.mrf.mxu0
    %v1583 = vadd.f32 %v1447, %v1582
    %v1584 = vpop.f32.mrf.mxu0
    %1585 = vdwg.mxu0
    %v1586 = vmax.f32 %v1580, 0.0
    %v1587 = vmax.f32 %v1583, 0.0
    %v1588 = vpack.c.bf16 %v1587, %v1586
    %v1589 = vld [vmem:[#allocation13] sm:$0xf]
    %v1590 = vld [vmem:[#allocation13 + $0x4] sm:$0xf]
    %v1591 = vld [vmem:[#allocation13 + $0x8] sm:$0xf]
    %v1592 = vld [vmem:[#allocation13 + $0xc] sm:$0xf]
    %v1593 = vld [vmem:[#allocation13 + $0x10] sm:$0xf]
    %v1594 = vld [vmem:[#allocation13 + $0x14] sm:$0xf]
    %v1595 = vld [vmem:[#allocation13 + $0x18] sm:$0xf]
    %v1596 = vld [vmem:[#allocation13 + $0x1c] sm:$0xf]
    %v1597 = vld [vmem:[#allocation13 + $0x20] sm:$0xf]
    %v1598 = vld [vmem:[#allocation13 + $0x24] sm:$0xf]
    %v1599 = vld [vmem:[#allocation13 + $0x28] sm:$0xf]
    %v1600 = vld [vmem:[#allocation13 + $0x2c] sm:$0xf]
    %v1601 = vld [vmem:[#allocation13 + $0x30] sm:$0xf]
    %v1602 = vld [vmem:[#allocation13 + $0x34] sm:$0xf]
    %v1603 = vld [vmem:[#allocation13 + $0x38] sm:$0xf]
    %v1604 = vld [vmem:[#allocation13 + $0x3c] sm:$0xf]
    %v1621 = vunpack.c.l.b16 %v1589
    %v1622 = vunpack.c.l.b16 %v1590
    %v1623 = vunpack.c.l.b16 %v1591
    %v1624 = vunpack.c.l.b16 %v1592
    %v1625 = vunpack.c.l.b16 %v1593
    %v1626 = vunpack.c.l.b16 %v1594
    %v1627 = vunpack.c.l.b16 %v1595
    %v1628 = vunpack.c.l.b16 %v1596
    %v1629 = vunpack.c.l.b16 %v1597
    %v1630 = vunpack.c.l.b16 %v1598
    %v1631 = vunpack.c.l.b16 %v1599
    %v1632 = vunpack.c.l.b16 %v1600
    %v1633 = vunpack.c.l.b16 %v1601
    %v1634 = vunpack.c.l.b16 %v1602
    %v1635 = vunpack.c.l.b16 %v1603
    %v1636 = vunpack.c.l.b16 %v1604
    %v1637 = vpack.c.b16 %v1622, %v1621
    %v1638 = vpack.c.b16 %v1624, %v1623
    %v1639 = vpack.c.b16 %v1626, %v1625
    %v1640 = vpack.c.b16 %v1628, %v1627
    %v1641 = vpack.c.b16 %v1630, %v1629
    %v1642 = vpack.c.b16 %v1632, %v1631
    %v1643 = vpack.c.b16 %v1634, %v1633
    %v1644 = vpack.c.b16 %v1636, %v1635
    %1653 = vmatprep.subr.bf16.mxu0 0
    %1654 = vmatpush1.bf16.msra.mxu0 %v1644
    %1655 = vmatprep.subr.bf16.mxu0 0
    %1656 = vmatpush1.bf16.msra.mxu0 %v1643
    %1657 = vmatprep.subr.bf16.mxu0 0
    %1658 = vmatpush1.bf16.msra.mxu0 %v1642
    %1659 = vmatprep.subr.bf16.mxu0 0
    %1660 = vmatpush1.bf16.msra.mxu0 %v1641
    %1661 = vmatprep.subr.bf16.mxu0 0
    %1662 = vmatpush1.bf16.msra.mxu0 %v1640
    %1663 = vmatprep.subr.bf16.mxu0 0
    %1664 = vmatpush1.bf16.msra.mxu0 %v1639
    %1665 = vmatprep.subr.bf16.mxu0 0
    %1666 = vmatpush1.bf16.msra.mxu0 %v1638
    %1667 = vmatprep.subr.bf16.mxu0 0
    %1668 = vmatpush1.bf16.msra.mxu0 %v1637
    %1669 = vmatprep.subr.bf16.mxu0 0
    %1670 = vmatpush2.bf16.msra.mxu0 0
    %1671 = vmatprep.subr.bf16.mxu0 0
    %1672 = vmatpush2.bf16.msra.mxu0 0
    %1673 = vmatprep.subr.bf16.mxu0 0
    %1674 = vmatpush2.bf16.msra.mxu0 0
    %1675 = vmatprep.subr.bf16.mxu0 0
    %1676 = vmatpush2.bf16.msra.mxu0 0
    %1677 = vmatprep.subr.bf16.mxu0 0
    %1678 = vmatpush2.bf16.msra.mxu0 0
    %1679 = vmatprep.subr.bf16.mxu0 0
    %1680 = vmatpush2.bf16.msra.mxu0 0
    %1681 = vmatprep.subr.bf16.mxu0 0
    %1682 = vmatpush2.bf16.msra.mxu0 0
    %1683 = vmatprep.subr.bf16.mxu0 0
    %1684 = vmatpush2.bf16.msra.mxu0 0
    %1685 = vmatprep.mubr.bf16.mxu0 0
    %1686 = vmatmul.mubr.bf16.gmra.mxu0 %v1588
    %v1687 = vpop.f32.mrf.mxu0
    %v1688 = vadd.f32 0.0, %v1687
    %v1689 = vpop.f32.mrf.mxu0
    %v1690 = vpop.f32.mrf.mxu0
    %v1691 = vadd.f32 0.0, %v1690
    %v1692 = vpop.f32.mrf.mxu0
    %1693 = vdwg.mxu0
    %v1694 = vmax.f32 %v1688, 0.0
    %v1695 = vmax.f32 %v1691, 0.0
    %v1696 = vpack.c.bf16 %v1695, %v1694
    %v1698 = vunpack.c.l.b16 %v1696
    %v1699 = vunpack.c.h.b16 %v1696
    %v1700 = vpack.c.b16 %v1698, %v1698
    %v1701 = vpack.c.b16 %v1699, %v1699
    %1704 = vst [vmem:[#allocation14] sm:$0xf] %v1700
    %1705 = vst [vmem:[#allocation14 + $0x4] sm:$0xf] %v1701
    // Predicated region
    $region78: #{tpu_custom_call.1} parent=1 // pred_check
      _
    $region79: #{tpu_custom_call.1} parent=1 // pred_check_branch
      %1707 = sbr.rel (0) target = $region81
    $region80: #{tpu_custom_call.1} parent=1 // pred_region
      %s1709 = ssub.s32 128, 128
      %1710 = vsyncadd [#allocation4], %s1709
      %s1711 = sshll.u32 [#allocation14], 4
      %s1712 = int_to_ptr.vmem [resolvable:$true] %s1711
      %1717 = dma.vmem_to_hbm [thread:$0]  %s1712, 128, %s12, [#allocation4], 64, 64, 4
    $region81: #{tpu_custom_call.1} parent=1 // pred_fallthru
      _
    // Predicated region
    $region82: #{tpu_custom_call.1} parent=1 // pred_check
      _
    $region83: #{tpu_custom_call.1} parent=1 // pred_check_branch
      %1719 = sbr.rel (0) target = $region85
    $region84: #{tpu_custom_call.1} parent=1 // pred_region
      %1720 = dma.done [#allocation4], 128
    $region85: #{tpu_custom_call.1} parent=1 // pred_fallthru
      _
    %1721 = vsyncpa [#allocation3], 1
    %1722 = vsyncpa [#allocation6], 1
    %1723 = vsyncpa [#allocation9], 1
    %1724 = vsyncpa [#allocation12], 1
    %1725 = vsyncpa [#allocation4], 1

</llo_original>
